<compile_context>
chip_gen: v5e
topology: v5e:2x2
jax: 0.10.0
libtpu: 0.0.40
codegen_flags: <defaults>
</compile_context>

<pallas_src>
import math
import functools

import jax
import jax.numpy as jnp
from jax import lax
from jax.experimental import pallas as pl
from jax.experimental.pallas import tpu as pltpu


def attblock_kernel(src_ref, trg_ref, bias_ref,
                    wq_ref, wk_ref, wv_ref, bq_ref, bk_ref, bv_ref,
                    wo_ref, bo_ref,
                    w1_ref, b1_ref, w2_ref, b2_ref,
                    g1_ref, beta1_ref, g2_ref, beta2_ref,
                    out_ref, attn_ref,
                    *, nhead, head_dim):
    """One (batch, query-tile) per grid step. All matmuls head-batched on the MXU."""
    f32 = jnp.float32
    cdt = wq_ref.dtype                     # compute dtype of the matmul operands
    approx = cdt != jnp.float32            # EUP approx reciprocal when bf16 compute

    src = src_ref[...]                     # (TQ, D)  (model dtype, f32)
    trg = trg_ref[...]                     # (LK, D)
    bias = bias_ref[...]                   # (1, LK) additive key-padding bias (f32)

    TQ, D = src.shape
    LK = trg.shape[0]
    H, hd = nhead, head_dim
    scale = 1.0 / math.sqrt(head_dim)

    src_c = src.astype(cdt)
    trg_c = trg.astype(cdt)

    # q/k/v projections — full-D contractions, f32 accumulation on the MXU.
    q = jnp.dot(src_c, wq_ref[...], preferred_element_type=f32) + bq_ref[...]  # (TQ,D)
    k = jnp.dot(trg_c, wk_ref[...], preferred_element_type=f32) + bk_ref[...]  # (LK,D)
    v = jnp.dot(trg_c, wv_ref[...], preferred_element_type=f32) + bv_ref[...]  # (LK,D)

    # Head-batched scores: (H, TQ, LK) with LK on the lane axis.
    q_h = (q * scale).astype(cdt).reshape(TQ, H, hd).transpose(1, 0, 2)  # (H,TQ,hd)
    k_h = k.astype(cdt).reshape(LK, H, hd).transpose(1, 0, 2)            # (H,LK,hd)
    v_h = v.astype(cdt).reshape(LK, H, hd).transpose(1, 0, 2)            # (H,LK,hd)
    s = jnp.einsum('hqd,hkd->hqk', q_h, k_h, preferred_element_type=f32)
    s = s + bias                                   # additive key-padding mask (hoisted)

    # Softmax over keys — elementwise math in f32 (VPU/EUP).
    m = jnp.max(s, axis=-1, keepdims=True)
    e = jnp.exp(s - m)
    denom = jnp.sum(e, axis=-1, keepdims=True)
    p = e * pl.reciprocal(denom, approx=approx)

    # Averaged-over-heads attention output (nn.MultiheadAttention default).
    attn_ref[...] = (jnp.sum(p, axis=0) * (1.0 / H)).astype(attn_ref.dtype)

    # Contexts for all heads, then ONE (TQ,D)@(D,D) output projection.
    ctx = jnp.einsum('hqk,hkd->hqd', p.astype(cdt), v_h,
                     preferred_element_type=f32)              # (H, TQ, hd)
    ctx = ctx.transpose(1, 0, 2).reshape(TQ, D)               # concat over heads
    proj = jnp.dot(ctx.astype(cdt), wo_ref[...],
                   preferred_element_type=f32) + bo_ref[...]  # (TQ, D)

    # Residual + LayerNorm1 (f32).
    x = src.astype(f32) + proj
    mu = jnp.mean(x, axis=-1, keepdims=True)
    var = jnp.mean(jnp.square(x - mu), axis=-1, keepdims=True)
    x = (x - mu) * lax.rsqrt(var + 1e-5) * g1_ref[...] + beta1_ref[...]

    # FFN: linear1 -> relu -> linear2, residual + LayerNorm2.
    h1 = jnp.maximum(
        jnp.dot(x.astype(cdt), w1_ref[...], preferred_element_type=f32) + b1_ref[...],
        0.0)
    h2 = jnp.dot(h1.astype(cdt), w2_ref[...], preferred_element_type=f32) + b2_ref[...]
    y = x + h2
    mu2 = jnp.mean(y, axis=-1, keepdims=True)
    var2 = jnp.mean(jnp.square(y - mu2), axis=-1, keepdims=True)
    out_ref[...] = ((y - mu2) * lax.rsqrt(var2 + 1e-5) * g2_ref[...]
                    + beta2_ref[...]).astype(out_ref.dtype)


def attblock_forward(src, trg, src_mask, params, nhead,
                     *, compute_dtype=jnp.float32, q_tile=128):
    B, LQ, D = src.shape
    LK = trg.shape[1]
    FF = params["w1"].shape[1]
    head_dim = D // nhead
    cdt = jnp.dtype(compute_dtype)

    # Key-padding mask as an additive bias, computed once in the wrapper.
    bias = jnp.where(src_mask > 0.5, 0.0, -1e30).astype(jnp.float32).reshape(B, 1, LK)

    # Matmul weights stored in the compute dtype (bf16 halves weight VMEM/HBM traffic).
    wq = params["wq"].astype(cdt); wk = params["wk"].astype(cdt)
    wv = params["wv"].astype(cdt); wo = params["wo"].astype(cdt)
    w1 = params["w1"].astype(cdt); w2 = params["w2"].astype(cdt)

    # LQ tiling: bound live VMEM per grid step and enable megacore / 2-TC sharding.
    TQ = LQ if LQ <= q_tile else q_tile
    LQp = ((LQ + TQ - 1) // TQ) * TQ
    if LQp != LQ:
        src = jnp.pad(src, ((0, 0), (0, LQp - LQ), (0, 0)))
    NQT = LQp // TQ

    # attention-matrix output in the compute dtype (halves HBM writeback in bf16).
    attn_dtype = cdt

    def w_spec(shape):
        n = len(shape)
        return pl.BlockSpec(shape, lambda b, qi: (0,) * n)

    # TODO(synk): weights could be single-buffered (pipeline_mode=pl.Buffered(1)) since
    # their index_map is constant; left at the default to keep lowering conservative.
    in_specs = [
        pl.BlockSpec((None, TQ, D), lambda b, qi: (b, qi, 0)),   # src (query tile)
        pl.BlockSpec((None, LK, D), lambda b, qi: (b, 0, 0)),    # trg (keys/values)
        pl.BlockSpec((None, 1, LK), lambda b, qi: (b, 0, 0)),    # additive mask bias
        w_spec((D, D)), w_spec((D, D)), w_spec((D, D)),          # Wq Wk Wv
        w_spec((1, D)), w_spec((1, D)), w_spec((1, D)),          # bq bk bv
        w_spec((D, D)), w_spec((1, D)),                          # Wo bo
        w_spec((D, FF)), w_spec((1, FF)),                        # W1 b1
        w_spec((FF, D)), w_spec((1, D)),                         # W2 b2
        w_spec((1, D)), w_spec((1, D)),                          # gamma1 beta1
        w_spec((1, D)), w_spec((1, D)),                          # gamma2 beta2
    ]
    out_specs = [
        pl.BlockSpec((None, TQ, D), lambda b, qi: (b, qi, 0)),
        pl.BlockSpec((None, TQ, LK), lambda b, qi: (b, qi, 0)),
    ]
    out_shape = [
        jax.ShapeDtypeStruct((B, LQp, D), src.dtype),
        jax.ShapeDtypeStruct((B, LQp, LK), attn_dtype),
    ]

    args = (src, trg, bias,
            wq, wk, wv, params["bq"], params["bk"], params["bv"],
            wo, params["bo"],
            w1, params["b1"], w2, params["b2"],
            params["g1"], params["beta1"], params["g2"], params["beta2"])

    # Advisory cost estimate for XLA's scheduler.
    per_tile_flops = 2 * (TQ * D * D            # q proj
                          + 2 * LK * D * D      # k, v proj
                          + nhead * TQ * LK * head_dim   # scores
                          + nhead * TQ * LK * head_dim   # contexts
                          + TQ * D * D          # out proj
                          + 2 * TQ * D * FF)    # ffn
    flops = int(B * NQT * per_tile_flops)
    transcendentals = int(B * NQT * (nhead * TQ * LK + 2 * TQ))
    bytes_accessed = int(sum(int(a.size) * a.dtype.itemsize for a in args)
                         + B * LQp * D * jnp.dtype(src.dtype).itemsize
                         + B * LQp * LK * jnp.dtype(attn_dtype).itemsize)

    kernel = functools.partial(attblock_kernel, nhead=nhead, head_dim=head_dim)
    out, attn = pl.pallas_call(
        kernel,
        out_shape=out_shape,
        grid=(B, NQT),
        in_specs=in_specs,
        out_specs=out_specs,
        compiler_params=pltpu.CompilerParams(
            dimension_semantics=("parallel", "parallel"),
            vmem_limit_bytes=48 * 1024 * 1024,   # above default scoped, below v7x 64 MiB
        ),
        cost_estimate=pl.CostEstimate(flops=flops,
                                      transcendentals=transcendentals,
                                      bytes_accessed=bytes_accessed),
    )(*args)

    if LQp != LQ:
        out = out[:, :LQ]
        attn = attn[:, :LQ]
    return out, attn
    # TODO(synk): flash-style online-softmax tiling over LK (for very long key
    # sequences) and lane-dense padding of D/LK to multiples of 128 are not
    # implemented at these small model dims.


def _layernorm(x, g, b, eps=1e-5):
    mu = jnp.mean(x, axis=-1, keepdims=True)
    var = jnp.mean((x - mu) ** 2, axis=-1, keepdims=True)
    return (x - mu) * lax.rsqrt(var + eps) * g + b


def attblock_reference(src, trg, src_mask, p, nhead):
    """Pure-JAX mirror of the PyTorch forward (eval mode) for validation."""
    B, LQ, D = src.shape
    LK = trg.shape[1]
    hd = D // nhead
    q = src @ p["wq"] + p["bq"][0]
    k = trg @ p["wk"] + p["bk"][0]
    v = trg @ p["wv"] + p["bv"][0]
    qh = q.reshape(B, LQ, nhead, hd).transpose(0, 2, 1, 3)
    kh = k.reshape(B, LK, nhead, hd).transpose(0, 2, 1, 3)
    vh = v.reshape(B, LK, nhead, hd).transpose(0, 2, 1, 3)
    s = jnp.einsum("bhqd,bhkd->bhqk", qh, kh) / math.sqrt(hd)
    mask = src_mask.astype(jnp.float32)[:, None, None, :]
    s = jnp.where(mask > 0.5, s, -1e30)
    pattn = jax.nn.softmax(s, axis=-1)
    ctx = jnp.einsum("bhqk,bhkd->bhqd", pattn, vh).transpose(0, 2, 1, 3).reshape(B, LQ, D)
    src2 = ctx @ p["wo"] + p["bo"][0]
    x = _layernorm(src + src2, p["g1"][0], p["beta1"][0])
    h1 = jax.nn.relu(x @ p["w1"] + p["b1"][0])
    h2 = h1 @ p["w2"] + p["b2"][0]
    y = _layernorm(x + h2, p["g2"][0], p["beta2"][0])
    return y, jnp.mean(pattn, axis=1)


def make_params(key, d_model, nhead, dim_feedforward):
    ks = jax.random.split(key, 12)
    s = 0.05
    p = {
        # stored transposed: (in_features, out_features) so kernel does x @ W + b
        "wq": jax.random.normal(ks[0], (d_model, d_model), jnp.float32) * s,
        "wk": jax.random.normal(ks[1], (d_model, d_model), jnp.float32) * s,
        "wv": jax.random.normal(ks[2], (d_model, d_model), jnp.float32) * s,
        "bq": jax.random.normal(ks[3], (1, d_model), jnp.float32) * s,
        "bk": jax.random.normal(ks[4], (1, d_model), jnp.float32) * s,
        "bv": jax.random.normal(ks[5], (1, d_model), jnp.float32) * s,
        "wo": jax.random.normal(ks[6], (d_model, d_model), jnp.float32) * s,
        "bo": jax.random.normal(ks[7], (1, d_model), jnp.float32) * s,
        "w1": jax.random.normal(ks[8], (d_model, dim_feedforward), jnp.float32) * s,
        "b1": jax.random.normal(ks[9], (1, dim_feedforward), jnp.float32) * s,
        "w2": jax.random.normal(ks[10], (dim_feedforward, d_model), jnp.float32) * s,
        "b2": jax.random.normal(ks[11], (1, d_model), jnp.float32) * s,
        "g1": jnp.ones((1, d_model), jnp.float32),
        "beta1": jnp.zeros((1, d_model), jnp.float32),
        "g2": jnp.ones((1, d_model), jnp.float32),
        "beta2": jnp.zeros((1, d_model), jnp.float32),
    }
    return p


if __name__ == "__main__":
    B, LQ, LK = 2, 8, 8
    D_MODEL, NHEAD, FF = 32, 4, 64

    key = jax.random.PRNGKey(0)
    k_src, k_trg, k_par = jax.random.split(key, 3)
    src = jax.random.normal(k_src, (B, LQ, D_MODEL), jnp.float32)
    trg = jax.random.normal(k_trg, (B, LK, D_MODEL), jnp.float32)
    # src_mask: 1 = attend, 0 = padded key (batch 1 has its last two keys padded)
    src_mask = jnp.ones((B, LK), jnp.float32).at[1, -2:].set(0.0)

    params = make_params(k_par, D_MODEL, NHEAD, FF)
    ref_out, ref_attn = attblock_reference(src, trg, src_mask, params, NHEAD)

    # f32 compute path: strict check against the pure-JAX reference.
    out, attn = attblock_forward(src, trg, src_mask, params, NHEAD)
    out = jax.block_until_ready(out)
    attn = jax.block_until_ready(attn)
    assert jnp.allclose(out, ref_out, atol=1e-4, rtol=1e-4), "output mismatch (f32)"
    assert jnp.allclose(attn, ref_attn, atol=1e-4, rtol=1e-4), "attention mismatch (f32)"

    # bf16-operand matmul path (MXU-friendly on v5e/v6e/v7x), loose tolerance.
    out_bf, attn_bf = attblock_forward(src, trg, src_mask, params, NHEAD,
                                       compute_dtype=jnp.bfloat16)
    out_bf = jax.block_until_ready(out_bf)
    attn_bf = jax.block_until_ready(attn_bf)
    assert jnp.max(jnp.abs(out_bf.astype(jnp.float32) - ref_out)) < 1e-1, \
        "output mismatch (bf16)"
    assert jnp.max(jnp.abs(attn_bf.astype(jnp.float32) - ref_attn)) < 1e-1, \
        "attention mismatch (bf16)"

    print("KERNEL_OK")
</pallas_src>

<mosaic_0001>
module attributes {stable_mosaic.version = 11 : i64} {
  func.func @attblock_kernel(%arg0: i32, %arg1: i32, %arg2: memref<1x8x32xf32, #tpu.memory_space<vmem>>, %arg3: memref<1x8x32xf32, #tpu.memory_space<vmem>>, %arg4: memref<1x1x8xf32, #tpu.memory_space<vmem>>, %arg5: memref<32x32xf32, #tpu.memory_space<vmem>>, %arg6: memref<32x32xf32, #tpu.memory_space<vmem>>, %arg7: memref<32x32xf32, #tpu.memory_space<vmem>>, %arg8: memref<1x32xf32, #tpu.memory_space<vmem>>, %arg9: memref<1x32xf32, #tpu.memory_space<vmem>>, %arg10: memref<1x32xf32, #tpu.memory_space<vmem>>, %arg11: memref<32x32xf32, #tpu.memory_space<vmem>>, %arg12: memref<1x32xf32, #tpu.memory_space<vmem>>, %arg13: memref<32x64xf32, #tpu.memory_space<vmem>>, %arg14: memref<1x64xf32, #tpu.memory_space<vmem>>, %arg15: memref<64x32xf32, #tpu.memory_space<vmem>>, %arg16: memref<1x32xf32, #tpu.memory_space<vmem>>, %arg17: memref<1x32xf32, #tpu.memory_space<vmem>>, %arg18: memref<1x32xf32, #tpu.memory_space<vmem>>, %arg19: memref<1x32xf32, #tpu.memory_space<vmem>>, %arg20: memref<1x32xf32, #tpu.memory_space<vmem>>, %arg21: memref<1x8x32xf32, #tpu.memory_space<vmem>>, %arg22: memref<1x8x8xf32, #tpu.memory_space<vmem>>) attributes {dimension_semantics = [#tpu.dimension_semantics<parallel>, #tpu.dimension_semantics<parallel>], iteration_bounds = array<i64: 2, 1>, scalar_prefetch = 0 : i64, scratch_operands = 0 : i64, tpu.core_type = #tpu.core_type<tc>, window_params = [{transform_indices = @transform_0, window_bounds = array<i64: 1, 8, 32>}, {transform_indices = @transform_1, window_bounds = array<i64: 1, 8, 32>}, {transform_indices = @transform_2, window_bounds = array<i64: 1, 1, 8>}, {pipeline_mode = #tpu.pipeline_mode<synchronous>, transform_indices = @transform_3, window_bounds = array<i64: 32, 32>}, {pipeline_mode = #tpu.pipeline_mode<synchronous>, transform_indices = @transform_4, window_bounds = array<i64: 32, 32>}, {pipeline_mode = #tpu.pipeline_mode<synchronous>, transform_indices = @transform_5, window_bounds = array<i64: 32, 32>}, {pipeline_mode = #tpu.pipeline_mode<synchronous>, transform_indices = @transform_6, window_bounds = array<i64: 1, 32>}, {pipeline_mode = #tpu.pipeline_mode<synchronous>, transform_indices = @transform_7, window_bounds = array<i64: 1, 32>}, {pipeline_mode = #tpu.pipeline_mode<synchronous>, transform_indices = @transform_8, window_bounds = array<i64: 1, 32>}, {pipeline_mode = #tpu.pipeline_mode<synchronous>, transform_indices = @transform_9, window_bounds = array<i64: 32, 32>}, {pipeline_mode = #tpu.pipeline_mode<synchronous>, transform_indices = @transform_10, window_bounds = array<i64: 1, 32>}, {pipeline_mode = #tpu.pipeline_mode<synchronous>, transform_indices = @transform_11, window_bounds = array<i64: 32, 64>}, {pipeline_mode = #tpu.pipeline_mode<synchronous>, transform_indices = @transform_12, window_bounds = array<i64: 1, 64>}, {pipeline_mode = #tpu.pipeline_mode<synchronous>, transform_indices = @transform_13, window_bounds = array<i64: 64, 32>}, {pipeline_mode = #tpu.pipeline_mode<synchronous>, transform_indices = @transform_14, window_bounds = array<i64: 1, 32>}, {pipeline_mode = #tpu.pipeline_mode<synchronous>, transform_indices = @transform_15, window_bounds = array<i64: 1, 32>}, {pipeline_mode = #tpu.pipeline_mode<synchronous>, transform_indices = @transform_16, window_bounds = array<i64: 1, 32>}, {pipeline_mode = #tpu.pipeline_mode<synchronous>, transform_indices = @transform_17, window_bounds = array<i64: 1, 32>}, {pipeline_mode = #tpu.pipeline_mode<synchronous>, transform_indices = @transform_18, window_bounds = array<i64: 1, 32>}, {transform_indices = @transform_19, window_bounds = array<i64: 1, 8, 32>}, {transform_indices = @transform_20, window_bounds = array<i64: 1, 8, 8>}]} {
    %c0 = arith.constant 0 : index
    %c0_0 = arith.constant 0 : index
    %c0_1 = arith.constant 0 : index
    %0 = vector.load %arg2[%c0, %c0_0, %c0_1] : memref<1x8x32xf32, #tpu.memory_space<vmem>>, vector<1x8x32xf32>
    %1 = vector.shape_cast %0 : vector<1x8x32xf32> to vector<8x32xf32>
    %c0_2 = arith.constant 0 : index
    %c0_3 = arith.constant 0 : index
    %c0_4 = arith.constant 0 : index
    %2 = vector.load %arg3[%c0_2, %c0_3, %c0_4] : memref<1x8x32xf32, #tpu.memory_space<vmem>>, vector<1x8x32xf32>
    %3 = vector.shape_cast %2 : vector<1x8x32xf32> to vector<8x32xf32>
    %c0_5 = arith.constant 0 : index
    %c0_6 = arith.constant 0 : index
    %c0_7 = arith.constant 0 : index
    %4 = vector.load %arg4[%c0_5, %c0_6, %c0_7] : memref<1x1x8xf32, #tpu.memory_space<vmem>>, vector<1x1x8xf32>
    %5 = vector.shape_cast %4 : vector<1x1x8xf32> to vector<1x8xf32>
    %c0_8 = arith.constant 0 : index
    %c0_9 = arith.constant 0 : index
    %6 = vector.load %arg5[%c0_8, %c0_9] : memref<32x32xf32, #tpu.memory_space<vmem>>, vector<32x32xf32>
    %cst = arith.constant dense<0.000000e+00> : vector<8x32xf32>
    %7 = tpu.matmul %1, %6, %cst {dimension_numbers = #tpu.dot_dimension_numbers<[1], [0], [0], [1], [0, 0, 1, 1], [], []>} : vector<8x32xf32>, vector<32x32xf32>, vector<8x32xf32> -> vector<8x32xf32>
    %c0_10 = arith.constant 0 : index
    %c0_11 = arith.constant 0 : index
    %8 = vector.load %arg8[%c0_10, %c0_11] : memref<1x32xf32, #tpu.memory_space<vmem>>, vector<1x32xf32>
    %9 = vector.broadcast %8 : vector<1x32xf32> to vector<8x32xf32>
    %10 = arith.addf %7, %9 : vector<8x32xf32>
    %c0_12 = arith.constant 0 : index
    %c0_13 = arith.constant 0 : index
    %11 = vector.load %arg6[%c0_12, %c0_13] : memref<32x32xf32, #tpu.memory_space<vmem>>, vector<32x32xf32>
    %cst_14 = arith.constant dense<0.000000e+00> : vector<8x32xf32>
    %12 = tpu.matmul %3, %11, %cst_14 {dimension_numbers = #tpu.dot_dimension_numbers<[1], [0], [0], [1], [0, 0, 1, 1], [], []>} : vector<8x32xf32>, vector<32x32xf32>, vector<8x32xf32> -> vector<8x32xf32>
    %c0_15 = arith.constant 0 : index
    %c0_16 = arith.constant 0 : index
    %13 = vector.load %arg9[%c0_15, %c0_16] : memref<1x32xf32, #tpu.memory_space<vmem>>, vector<1x32xf32>
    %14 = vector.broadcast %13 : vector<1x32xf32> to vector<8x32xf32>
    %15 = arith.addf %12, %14 : vector<8x32xf32>
    %c0_17 = arith.constant 0 : index
    %c0_18 = arith.constant 0 : index
    %16 = vector.load %arg7[%c0_17, %c0_18] : memref<32x32xf32, #tpu.memory_space<vmem>>, vector<32x32xf32>
    %cst_19 = arith.constant dense<0.000000e+00> : vector<8x32xf32>
    %17 = tpu.matmul %3, %16, %cst_19 {dimension_numbers = #tpu.dot_dimension_numbers<[1], [0], [0], [1], [0, 0, 1, 1], [], []>} : vector<8x32xf32>, vector<32x32xf32>, vector<8x32xf32> -> vector<8x32xf32>
    %c0_20 = arith.constant 0 : index
    %c0_21 = arith.constant 0 : index
    %18 = vector.load %arg10[%c0_20, %c0_21] : memref<1x32xf32, #tpu.memory_space<vmem>>, vector<1x32xf32>
    %19 = vector.broadcast %18 : vector<1x32xf32> to vector<8x32xf32>
    %20 = arith.addf %17, %19 : vector<8x32xf32>
    %cst_22 = arith.constant 0.353553385 : f32
    %21 = vector.broadcast %cst_22 : f32 to vector<8x32xf32>
    %22 = arith.mulf %10, %21 : vector<8x32xf32>
    %23 = vector.shape_cast %22 : vector<8x32xf32> to vector<8x4x8xf32>
    %24 = tpu.transpose %23, [1, 0, 2] : vector<8x4x8xf32> -> vector<4x8x8xf32>
    %25 = vector.shape_cast %15 : vector<8x32xf32> to vector<8x4x8xf32>
    %26 = tpu.transpose %25, [1, 0, 2] : vector<8x4x8xf32> -> vector<4x8x8xf32>
    %27 = vector.shape_cast %20 : vector<8x32xf32> to vector<8x4x8xf32>
    %28 = tpu.transpose %27, [1, 0, 2] : vector<8x4x8xf32> -> vector<4x8x8xf32>
    "tpu.trace_start"() <{level = 10 : i32, message = "hqd,hkd->hqk"}> : () -> ()
    %cst_23 = arith.constant dense<0.000000e+00> : vector<4x8x8xf32>
    %29 = tpu.matmul %24, %26, %cst_23 {dimension_numbers = #tpu.dot_dimension_numbers<[2], [2], [1], [1], [0, 0, 0, 1, 1, 1], [0], [0]>} : vector<4x8x8xf32>, vector<4x8x8xf32>, vector<4x8x8xf32> -> vector<4x8x8xf32>
    "tpu.trace_stop"() : () -> ()
    %30 = vector.shape_cast %5 : vector<1x8xf32> to vector<1x1x8xf32>
    %31 = vector.broadcast %30 : vector<1x1x8xf32> to vector<4x8x8xf32>
    %32 = arith.addf %29, %31 : vector<4x8x8xf32>
    %cst_24 = arith.constant dense<0xFF800000> : vector<4x8xf32>
    %33 = vector.multi_reduction <maximumf>, %32, %cst_24 [2] : vector<4x8x8xf32> to vector<4x8xf32>
    %34 = vector.shape_cast %33 : vector<4x8xf32> to vector<4x8x1xf32>
    %35 = vector.broadcast %34 : vector<4x8x1xf32> to vector<4x8x8xf32>
    %36 = arith.subf %32, %35 : vector<4x8x8xf32>
    %37 = math.exp %36 : vector<4x8x8xf32>
    %cst_25 = arith.constant dense<0.000000e+00> : vector<4x8xf32>
    %38 = vector.multi_reduction <add>, %37, %cst_25 [2] : vector<4x8x8xf32> to vector<4x8xf32>
    %39 = vector.shape_cast %38 : vector<4x8xf32> to vector<4x8x1xf32>
    %40 = tpu.reciprocal %39 : vector<4x8x1xf32> -> vector<4x8x1xf32>
    %41 = vector.broadcast %40 : vector<4x8x1xf32> to vector<4x8x8xf32>
    %42 = arith.mulf %37, %41 : vector<4x8x8xf32>
    %cst_26 = arith.constant dense<0.000000e+00> : vector<8x8xf32>
    %43 = vector.multi_reduction <add>, %42, %cst_26 [0] : vector<4x8x8xf32> to vector<8x8xf32>
    %cst_27 = arith.constant 2.500000e-01 : f32
    %44 = vector.broadcast %cst_27 : f32 to vector<8x8xf32>
    %45 = arith.mulf %43, %44 : vector<8x8xf32>
    %c0_28 = arith.constant 0 : index
    %c0_29 = arith.constant 0 : index
    %c0_30 = arith.constant 0 : index
    %46 = vector.load %arg22[%c0_28, %c0_29, %c0_30] : memref<1x8x8xf32, #tpu.memory_space<vmem>>, vector<1x8x8xf32>
    %47 = vector.shape_cast %46 : vector<1x8x8xf32> to vector<8x8xf32>
    %48 = vector.shape_cast %45 : vector<8x8xf32> to vector<1x8x8xf32>
    tpu.vector_store %arg22[%c0_28, %c0_29, %c0_30], %48 {strides = array<i32>} : memref<1x8x8xf32, #tpu.memory_space<vmem>>, vector<1x8x8xf32>,
    "tpu.trace_start"() <{level = 10 : i32, message = "hqk,hkd->hqd"}> : () -> ()
    %cst_31 = arith.constant dense<0.000000e+00> : vector<4x8x8xf32>
    %49 = tpu.matmul %42, %28, %cst_31 {dimension_numbers = #tpu.dot_dimension_numbers<[2], [1], [1], [2], [0, 0, 0, 1, 1, 2], [0], [0]>} : vector<4x8x8xf32>, vector<4x8x8xf32>, vector<4x8x8xf32> -> vector<4x8x8xf32>
    "tpu.trace_stop"() : () -> ()
    %50 = tpu.transpose %49, [1, 0, 2] : vector<4x8x8xf32> -> vector<8x4x8xf32>
    %51 = vector.shape_cast %50 : vector<8x4x8xf32> to vector<8x32xf32>
    %c0_32 = arith.constant 0 : index
    %c0_33 = arith.constant 0 : index
    %52 = vector.load %arg11[%c0_32, %c0_33] : memref<32x32xf32, #tpu.memory_space<vmem>>, vector<32x32xf32>
    %cst_34 = arith.constant dense<0.000000e+00> : vector<8x32xf32>
    %53 = tpu.matmul %51, %52, %cst_34 {dimension_numbers = #tpu.dot_dimension_numbers<[1], [0], [0], [1], [0, 0, 1, 1], [], []>} : vector<8x32xf32>, vector<32x32xf32>, vector<8x32xf32> -> vector<8x32xf32>
    %c0_35 = arith.constant 0 : index
    %c0_36 = arith.constant 0 : index
    %54 = vector.load %arg12[%c0_35, %c0_36] : memref<1x32xf32, #tpu.memory_space<vmem>>, vector<1x32xf32>
    %55 = vector.broadcast %54 : vector<1x32xf32> to vector<8x32xf32>
    %56 = arith.addf %53, %55 : vector<8x32xf32>
    %57 = arith.addf %1, %56 : vector<8x32xf32>
    %cst_37 = arith.constant dense<0.000000e+00> : vector<8xf32>
    %58 = vector.multi_reduction <add>, %57, %cst_37 [1] : vector<8x32xf32> to vector<8xf32>
    %59 = vector.shape_cast %58 : vector<8xf32> to vector<8x1xf32>
    %cst_38 = arith.constant 3.200000e+01 : f32
    %60 = vector.broadcast %cst_38 : f32 to vector<8x1xf32>
    %61 = arith.divf %59, %60 : vector<8x1xf32>
    %62 = vector.broadcast %61 : vector<8x1xf32> to vector<8x32xf32>
    %63 = arith.subf %57, %62 : vector<8x32xf32>
    %64 = arith.mulf %63, %63 : vector<8x32xf32>
    %cst_39 = arith.constant dense<0.000000e+00> : vector<8xf32>
    %65 = vector.multi_reduction <add>, %64, %cst_39 [1] : vector<8x32xf32> to vector<8xf32>
    %66 = vector.shape_cast %65 : vector<8xf32> to vector<8x1xf32>
    %cst_40 = arith.constant 3.200000e+01 : f32
    %67 = vector.broadcast %cst_40 : f32 to vector<8x1xf32>
    %68 = arith.divf %66, %67 : vector<8x1xf32>
    %69 = vector.broadcast %61 : vector<8x1xf32> to vector<8x32xf32>
    %70 = arith.subf %57, %69 : vector<8x32xf32>
    %cst_41 = arith.constant 9.99999974E-6 : f32
    %71 = vector.broadcast %cst_41 : f32 to vector<8x1xf32>
    %72 = arith.addf %68, %71 : vector<8x1xf32>
    %73 = math.rsqrt %72 : vector<8x1xf32>
    %74 = vector.broadcast %73 : vector<8x1xf32> to vector<8x32xf32>
    %75 = arith.mulf %70, %74 : vector<8x32xf32>
    %c0_42 = arith.constant 0 : index
    %c0_43 = arith.constant 0 : index
    %76 = vector.load %arg17[%c0_42, %c0_43] : memref<1x32xf32, #tpu.memory_space<vmem>>, vector<1x32xf32>
    %77 = vector.broadcast %76 : vector<1x32xf32> to vector<8x32xf32>
    %78 = arith.mulf %75, %77 : vector<8x32xf32>
    %c0_44 = arith.constant 0 : index
    %c0_45 = arith.constant 0 : index
    %79 = vector.load %arg18[%c0_44, %c0_45] : memref<1x32xf32, #tpu.memory_space<vmem>>, vector<1x32xf32>
    %80 = vector.broadcast %79 : vector<1x32xf32> to vector<8x32xf32>
    %81 = arith.addf %78, %80 : vector<8x32xf32>
    %c0_46 = arith.constant 0 : index
    %c0_47 = arith.constant 0 : index
    %82 = vector.load %arg13[%c0_46, %c0_47] : memref<32x64xf32, #tpu.memory_space<vmem>>, vector<32x64xf32>
    %cst_48 = arith.constant dense<0.000000e+00> : vector<8x64xf32>
    %83 = tpu.matmul %81, %82, %cst_48 {dimension_numbers = #tpu.dot_dimension_numbers<[1], [0], [0], [1], [0, 0, 1, 1], [], []>} : vector<8x32xf32>, vector<32x64xf32>, vector<8x64xf32> -> vector<8x64xf32>
    %c0_49 = arith.constant 0 : index
    %c0_50 = arith.constant 0 : index
    %84 = vector.load %arg14[%c0_49, %c0_50] : memref<1x64xf32, #tpu.memory_space<vmem>>, vector<1x64xf32>
    %85 = vector.broadcast %84 : vector<1x64xf32> to vector<8x64xf32>
    %86 = arith.addf %83, %85 : vector<8x64xf32>
    %cst_51 = arith.constant 0.000000e+00 : f32
    %87 = vector.broadcast %cst_51 : f32 to vector<8x64xf32>
    %88 = arith.maximumf %86, %87 : vector<8x64xf32>
    %c0_52 = arith.constant 0 : index
    %c0_53 = arith.constant 0 : index
    %89 = vector.load %arg15[%c0_52, %c0_53] : memref<64x32xf32, #tpu.memory_space<vmem>>, vector<64x32xf32>
    %cst_54 = arith.constant dense<0.000000e+00> : vector<8x32xf32>
    %90 = tpu.matmul %88, %89, %cst_54 {dimension_numbers = #tpu.dot_dimension_numbers<[1], [0], [0], [1], [0, 0, 1, 1], [], []>} : vector<8x64xf32>, vector<64x32xf32>, vector<8x32xf32> -> vector<8x32xf32>
    %c0_55 = arith.constant 0 : index
    %c0_56 = arith.constant 0 : index
    %91 = vector.load %arg16[%c0_55, %c0_56] : memref<1x32xf32, #tpu.memory_space<vmem>>, vector<1x32xf32>
    %92 = vector.broadcast %91 : vector<1x32xf32> to vector<8x32xf32>
    %93 = arith.addf %90, %92 : vector<8x32xf32>
    %94 = arith.addf %81, %93 : vector<8x32xf32>
    %cst_57 = arith.constant dense<0.000000e+00> : vector<8xf32>
    %95 = vector.multi_reduction <add>, %94, %cst_57 [1] : vector<8x32xf32> to vector<8xf32>
    %96 = vector.shape_cast %95 : vector<8xf32> to vector<8x1xf32>
    %cst_58 = arith.constant 3.200000e+01 : f32
    %97 = vector.broadcast %cst_58 : f32 to vector<8x1xf32>
    %98 = arith.divf %96, %97 : vector<8x1xf32>
    %99 = vector.broadcast %98 : vector<8x1xf32> to vector<8x32xf32>
    %100 = arith.subf %94, %99 : vector<8x32xf32>
    %101 = arith.mulf %100, %100 : vector<8x32xf32>
    %cst_59 = arith.constant dense<0.000000e+00> : vector<8xf32>
    %102 = vector.multi_reduction <add>, %101, %cst_59 [1] : vector<8x32xf32> to vector<8xf32>
    %103 = vector.shape_cast %102 : vector<8xf32> to vector<8x1xf32>
    %cst_60 = arith.constant 3.200000e+01 : f32
    %104 = vector.broadcast %cst_60 : f32 to vector<8x1xf32>
    %105 = arith.divf %103, %104 : vector<8x1xf32>
    %106 = vector.broadcast %98 : vector<8x1xf32> to vector<8x32xf32>
    %107 = arith.subf %94, %106 : vector<8x32xf32>
    %cst_61 = arith.constant 9.99999974E-6 : f32
    %108 = vector.broadcast %cst_61 : f32 to vector<8x1xf32>
    %109 = arith.addf %105, %108 : vector<8x1xf32>
    %110 = math.rsqrt %109 : vector<8x1xf32>
    %111 = vector.broadcast %110 : vector<8x1xf32> to vector<8x32xf32>
    %112 = arith.mulf %107, %111 : vector<8x32xf32>
    %c0_62 = arith.constant 0 : index
    %c0_63 = arith.constant 0 : index
    %113 = vector.load %arg19[%c0_62, %c0_63] : memref<1x32xf32, #tpu.memory_space<vmem>>, vector<1x32xf32>
    %114 = vector.broadcast %113 : vector<1x32xf32> to vector<8x32xf32>
    %115 = arith.mulf %112, %114 : vector<8x32xf32>
    %c0_64 = arith.constant 0 : index
    %c0_65 = arith.constant 0 : index
    %116 = vector.load %arg20[%c0_64, %c0_65] : memref<1x32xf32, #tpu.memory_space<vmem>>, vector<1x32xf32>
    %117 = vector.broadcast %116 : vector<1x32xf32> to vector<8x32xf32>
    %118 = arith.addf %115, %117 : vector<8x32xf32>
    %c0_66 = arith.constant 0 : index
    %c0_67 = arith.constant 0 : index
    %c0_68 = arith.constant 0 : index
    %119 = vector.load %arg21[%c0_66, %c0_67, %c0_68] : memref<1x8x32xf32, #tpu.memory_space<vmem>>, vector<1x8x32xf32>
    %120 = vector.shape_cast %119 : vector<1x8x32xf32> to vector<8x32xf32>
    %121 = vector.shape_cast %118 : vector<8x32xf32> to vector<1x8x32xf32>
    tpu.vector_store %arg21[%c0_66, %c0_67, %c0_68], %121 {strides = array<i32>} : memref<1x8x32xf32, #tpu.memory_space<vmem>>, vector<1x8x32xf32>,
    return
  }
  func.func @transform_0(%arg0: i32, %arg1: i32) -> (i32, i32, i32) {
    %c0_i32 = arith.constant 0 : i32
    %c0_i32_0 = arith.constant 0 : i32
    return %arg0, %arg1, %c0_i32 : i32, i32, i32
  }
  func.func @transform_1(%arg0: i32, %arg1: i32) -> (i32, i32, i32) {
    %c0_i32 = arith.constant 0 : i32
    %c0_i32_0 = arith.constant 0 : i32
    %c0_i32_1 = arith.constant 0 : i32
    return %arg0, %c0_i32, %c0_i32_0 : i32, i32, i32
  }
  func.func @transform_2(%arg0: i32, %arg1: i32) -> (i32, i32, i32) {
    %c0_i32 = arith.constant 0 : i32
    %c0_i32_0 = arith.constant 0 : i32
    %c0_i32_1 = arith.constant 0 : i32
    return %arg0, %c0_i32, %c0_i32_0 : i32, i32, i32
  }
  func.func @transform_3(%arg0: i32, %arg1: i32) -> (i32, i32) {
    %c0_i32 = arith.constant 0 : i32
    %c0_i32_0 = arith.constant 0 : i32
    %c0_i32_1 = arith.constant 0 : i32
    return %c0_i32, %c0_i32_0 : i32, i32
  }
  func.func @transform_4(%arg0: i32, %arg1: i32) -> (i32, i32) {
    %c0_i32 = arith.constant 0 : i32
    %c0_i32_0 = arith.constant 0 : i32
    %c0_i32_1 = arith.constant 0 : i32
    return %c0_i32, %c0_i32_0 : i32, i32
  }
  func.func @transform_5(%arg0: i32, %arg1: i32) -> (i32, i32) {
    %c0_i32 = arith.constant 0 : i32
    %c0_i32_0 = arith.constant 0 : i32
    %c0_i32_1 = arith.constant 0 : i32
    return %c0_i32, %c0_i32_0 : i32, i32
  }
  func.func @transform_6(%arg0: i32, %arg1: i32) -> (i32, i32) {
    %c0_i32 = arith.constant 0 : i32
    %c0_i32_0 = arith.constant 0 : i32
    %c0_i32_1 = arith.constant 0 : i32
    return %c0_i32, %c0_i32_0 : i32, i32
  }
  func.func @transform_7(%arg0: i32, %arg1: i32) -> (i32, i32) {
    %c0_i32 = arith.constant 0 : i32
    %c0_i32_0 = arith.constant 0 : i32
    %c0_i32_1 = arith.constant 0 : i32
    return %c0_i32, %c0_i32_0 : i32, i32
  }
  func.func @transform_8(%arg0: i32, %arg1: i32) -> (i32, i32) {
    %c0_i32 = arith.constant 0 : i32
    %c0_i32_0 = arith.constant 0 : i32
    %c0_i32_1 = arith.constant 0 : i32
    return %c0_i32, %c0_i32_0 : i32, i32
  }
  func.func @transform_9(%arg0: i32, %arg1: i32) -> (i32, i32) {
    %c0_i32 = arith.constant 0 : i32
    %c0_i32_0 = arith.constant 0 : i32
    %c0_i32_1 = arith.constant 0 : i32
    return %c0_i32, %c0_i32_0 : i32, i32
  }
  func.func @transform_10(%arg0: i32, %arg1: i32) -> (i32, i32) {
    %c0_i32 = arith.constant 0 : i32
    %c0_i32_0 = arith.constant 0 : i32
    %c0_i32_1 = arith.constant 0 : i32
    return %c0_i32, %c0_i32_0 : i32, i32
  }
  func.func @transform_11(%arg0: i32, %arg1: i32) -> (i32, i32) {
    %c0_i32 = arith.constant 0 : i32
    %c0_i32_0 = arith.constant 0 : i32
    %c0_i32_1 = arith.constant 0 : i32
    return %c0_i32, %c0_i32_0 : i32, i32
  }
  func.func @transform_12(%arg0: i32, %arg1: i32) -> (i32, i32) {
    %c0_i32 = arith.constant 0 : i32
    %c0_i32_0 = arith.constant 0 : i32
    %c0_i32_1 = arith.constant 0 : i32
    return %c0_i32, %c0_i32_0 : i32, i32
  }
  func.func @transform_13(%arg0: i32, %arg1: i32) -> (i32, i32) {
    %c0_i32 = arith.constant 0 : i32
    %c0_i32_0 = arith.constant 0 : i32
    %c0_i32_1 = arith.constant 0 : i32
    return %c0_i32, %c0_i32_0 : i32, i32
  }
  func.func @transform_14(%arg0: i32, %arg1: i32) -> (i32, i32) {
    %c0_i32 = arith.constant 0 : i32
    %c0_i32_0 = arith.constant 0 : i32
    %c0_i32_1 = arith.constant 0 : i32
    return %c0_i32, %c0_i32_0 : i32, i32
  }
  func.func @transform_15(%arg0: i32, %arg1: i32) -> (i32, i32) {
    %c0_i32 = arith.constant 0 : i32
    %c0_i32_0 = arith.constant 0 : i32
    %c0_i32_1 = arith.constant 0 : i32
    return %c0_i32, %c0_i32_0 : i32, i32
  }
  func.func @transform_16(%arg0: i32, %arg1: i32) -> (i32, i32) {
    %c0_i32 = arith.constant 0 : i32
    %c0_i32_0 = arith.constant 0 : i32
    %c0_i32_1 = arith.constant 0 : i32
    return %c0_i32, %c0_i32_0 : i32, i32
  }
  func.func @transform_17(%arg0: i32, %arg1: i32) -> (i32, i32) {
    %c0_i32 = arith.constant 0 : i32
    %c0_i32_0 = arith.constant 0 : i32
    %c0_i32_1 = arith.constant 0 : i32
    return %c0_i32, %c0_i32_0 : i32, i32
  }
  func.func @transform_18(%arg0: i32, %arg1: i32) -> (i32, i32) {
    %c0_i32 = arith.constant 0 : i32
    %c0_i32_0 = arith.constant 0 : i32
    %c0_i32_1 = arith.constant 0 : i32
    return %c0_i32, %c0_i32_0 : i32, i32
  }
  func.func @transform_19(%arg0: i32, %arg1: i32) -> (i32, i32, i32) {
    %c0_i32 = arith.constant 0 : i32
    %c0_i32_0 = arith.constant 0 : i32
    return %arg0, %arg1, %c0_i32 : i32, i32, i32
  }
  func.func @transform_20(%arg0: i32, %arg1: i32) -> (i32, i32, i32) {
    %c0_i32 = arith.constant 0 : i32
    %c0_i32_0 = arith.constant 0 : i32
    return %arg0, %arg1, %c0_i32 : i32, i32, i32
  }
}

</mosaic_0001>

<llo_original>
// kernel: tpu_custom_call.1
$region0: #{tpu_custom_call.1}
  #allocation0 [shape = 'u32[]', space=smem, size = 0x4, offset = 0x4, fixed_abs, tag = 'smem constant byte address 0x4 - core index']
  #allocation1 [shape = 'u32[72,128]{1,0:T(1,128)}', space=vmem, size = 0x9000, scoped, tag = 'internal scratch']
  %s0 = inlined_call_operand.hbm [shape: f32[2,8,32], index: 0, kind: input, shape index: {}]
  %s1 = inlined_call_operand.hbm [shape: f32[2,8,32], index: 1, kind: input, shape index: {}]
  %s2 = inlined_call_operand.hbm [shape: f32[2,1,8], index: 2, kind: input, shape index: {}]
  %s3 = inlined_call_operand.vmem [shape: f32[32,32], index: 3, kind: input, shape index: {}]
  %s4 = inlined_call_operand.vmem [shape: f32[32,32], index: 4, kind: input, shape index: {}]
  %s5 = inlined_call_operand.vmem [shape: f32[32,32], index: 5, kind: input, shape index: {}]
  %s6 = inlined_call_operand.vmem [shape: f32[1,32], index: 6, kind: input, shape index: {}]
  %s7 = inlined_call_operand.vmem [shape: f32[1,32], index: 7, kind: input, shape index: {}]
  %s8 = inlined_call_operand.vmem [shape: f32[1,32], index: 8, kind: input, shape index: {}]
  %s9 = inlined_call_operand.hbm [shape: f32[32,32], index: 9, kind: input, shape index: {}]
  %s10 = inlined_call_operand.vmem [shape: f32[1,32], index: 10, kind: input, shape index: {}]
  %s11 = inlined_call_operand.hbm [shape: f32[32,64], index: 11, kind: input, shape index: {}]
  %s12 = inlined_call_operand.vmem [shape: f32[1,64], index: 12, kind: input, shape index: {}]
  %s13 = inlined_call_operand.vmem [shape: f32[64,32], index: 13, kind: input, shape index: {}]
  %s14 = inlined_call_operand.vmem [shape: f32[1,32], index: 14, kind: input, shape index: {}]
  %s15 = inlined_call_operand.vmem [shape: f32[1,32], index: 15, kind: input, shape index: {}]
  %s16 = inlined_call_operand.vmem [shape: f32[1,32], index: 16, kind: input, shape index: {}]
  %s17 = inlined_call_operand.vmem [shape: f32[1,32], index: 17, kind: input, shape index: {}]
  %s18 = inlined_call_operand.vmem [shape: f32[1,32], index: 18, kind: input, shape index: {}]
  %s19 = inlined_call_operand.hbm [shape: f32[2,8,32], index: 19, kind: output, shape index: {0}]
  %s20 = inlined_call_operand.hbm [shape: f32[2,8,8], index: 20, kind: output, shape index: {1}]
  %21 = xla_tuple %s19, %s20
  %s22 = sld [smem:[#allocation0]]
  $region137: #{tpu_custom_call.1} parent=0
    _
  %s24 = ssub.s32 1, %s22
  %s25 = scalar_select 0, %s24, %s22
  $region1: #{tpu_custom_call.1} parent=0
    #allocation2 [shape = 'u8[8192]{0}', space=vmem, size = 0x2000, scoped, tag = 'input window, operand 0']
    #allocation3 [shape = 's32[2]{0}', space=sflag, size = 0x8, scoped, tag = 'scoped memory for tpu_custom_call.1']
    #allocation4 [shape = 's32[2]{0}', space=sflag, size = 0x8, scoped, tag = 'scoped memory for tpu_custom_call.1']
    #allocation5 [shape = 'u8[8192]{0}', space=vmem, size = 0x2000, scoped, tag = 'input window, operand 1']
    #allocation6 [shape = 's32[2]{0}', space=sflag, size = 0x8, scoped, tag = 'scoped memory for tpu_custom_call.1']
    #allocation7 [shape = 'u8[1024]{0}', space=vmem, size = 0x400, scoped, tag = 'input window, operand 2']
    #allocation8 [shape = 'u8[16384]{0}', space=vmem, size = 0x4000, scoped, tag = 'input window, operand 9, single buffered']
    #allocation9 [shape = 's32[1]{0}', space=sflag, size = 0x4, scoped, tag = 'scoped memory for tpu_custom_call.1']
    #allocation10 [shape = 'u8[16384]{0}', space=vmem, size = 0x4000, scoped, tag = 'input window, operand 11, single buffered']
    #allocation11 [shape = 'u8[8192]{0}', space=vmem, size = 0x2000, scoped, tag = 'output window, operand 0']
    #allocation12 [shape = 'u8[8192]{0}', space=vmem, size = 0x2000, scoped, tag = 'output window, operand 1']
    #allocation13 [shape = 's32[2]{0}', space=sflag, size = 0x8, scoped, tag = 'scoped memory for tpu_custom_call.1']
    %26 = vsyncpa [#allocation3], 0
    %s27 = scalar_lea.sflag [#allocation3], 1
    %28 = vsyncpa %s27, 0
    %29 = vsyncpa [#allocation6], 0
    %s30 = scalar_lea.sflag [#allocation6], 1
    %31 = vsyncpa %s30, 0
    %32 = vsyncpa [#allocation9], 0
    %33 = vsyncpa [#allocation4], 0
    %s34 = scalar_lea.sflag [#allocation4], 1
    %35 = vsyncpa %s34, 0
    %36 = vsyncpa [#allocation13], 0
    %s37 = scalar_lea.sflag [#allocation13], 1
    %38 = vsyncpa %s37, 0
    loop: start=0, step=1, limit=4
    $region2: #{tpu_custom_call.1} parent=1 // loop_pre_header
      _
    $region3: #{tpu_custom_call.1} parent=1 // loop_header
      %s40 = sphi 0, %s44
      %p41 = scmp.ge.s32.totalorder %s40, 4
      %s47 = sphi 0, %s59
      %s48 = sphi 0, %s55
      %s49 = sphi 0, %s47
      %s50 = sphi 0, %s48
      %s51 = sphi 0, %s49
      %s52 = sphi 0, %s50
      %s64 = sphi 0, %s66
      %s67 = sphi 0, %s64
      %s68 = sphi 0, %s67
      %s84 = sphi 0, %s68
      %s90 = sphi 0, %s92
      %s93 = sphi 0, %s90
      %s94 = sphi 0, %s93
      %s110 = sphi 0, %s94
      %s116 = sphi 0, %s118
      %s119 = sphi 0, %s116
      %s120 = sphi 0, %s119
      %s136 = sphi 0, %s120
      %s140 = sphi 0, %s140
      %s142 = sphi 0, %s140
      %s143 = sphi 0, %s142
      %s157 = sphi 0, %s143
      %s161 = sphi 0, %s161
      %s163 = sphi 0, %s161
      %s164 = sphi 0, %s163
      %s178 = sphi 0, %s164
      %s182 = sphi 0, %s182
      %s184 = sphi 0, %s182
      %s185 = sphi 0, %s184
      %s199 = sphi 0, %s185
      %s203 = sphi 0, %s203
      %s205 = sphi 0, %s203
      %s206 = sphi 0, %s205
      %s220 = sphi 0, %s206
      %s224 = sphi 0, %s224
      %s226 = sphi 0, %s224
      %s227 = sphi 0, %s226
      %s241 = sphi 0, %s227
      %s245 = sphi 0, %s245
      %s247 = sphi 0, %s245
      %s248 = sphi 0, %s247
      %s262 = sphi 0, %s248
      %s266 = sphi 0, %s266
      %s268 = sphi 0, %s266
      %s269 = sphi 0, %s268
      %s283 = sphi 0, %s269
      %s287 = sphi 0, %s287
      %s289 = sphi 0, %s287
      %s290 = sphi 0, %s289
      %s304 = sphi 0, %s290
      %s308 = sphi 0, %s308
      %s310 = sphi 0, %s308
      %s311 = sphi 0, %s310
      %s325 = sphi 0, %s311
      %s329 = sphi 0, %s329
      %s331 = sphi 0, %s329
      %s332 = sphi 0, %s331
      %s346 = sphi 0, %s332
      %s350 = sphi 0, %s350
      %s352 = sphi 0, %s350
      %s353 = sphi 0, %s352
      %s367 = sphi 0, %s353
      %s371 = sphi 0, %s371
      %s373 = sphi 0, %s371
      %s374 = sphi 0, %s373
      %s388 = sphi 0, %s374
      %s392 = sphi 0, %s392
      %s394 = sphi 0, %s392
      %s395 = sphi 0, %s394
      %s409 = sphi 0, %s395
      %s413 = sphi 0, %s413
      %s415 = sphi 0, %s413
      %s416 = sphi 0, %s415
      %s430 = sphi 0, %s416
      %s434 = sphi 0, %s434
      %s436 = sphi 0, %s434
      %s437 = sphi 0, %s436
      %s451 = sphi 0, %s437
      %s455 = sphi 0, %s455
      %s457 = sphi 0, %s455
      %s458 = sphi 0, %s457
      %s472 = sphi 0, %s458
      %s480 = sphi 0, %s482
      %s483 = sphi 0, %s480
      %s484 = sphi 0, %s483
      %s500 = sphi 0, %s484
      %s508 = sphi 0, %s510
      %s511 = sphi 0, %s508
      %s512 = sphi 0, %s511
      %s528 = sphi 0, %s512
    $region4: #{tpu_custom_call.1} parent=1 // loop_header_branch
      %43 = sbr.rel (%p41) target = $region8
    $region5: #{tpu_custom_call.1} parent=1 // loop_body
      %s45 = ssub.s32 %s40, 1
      %s46 = ssub.s32 %s40, 2
      %s53 = sadd.s32 1, %s48
      %p54 = scmp.ge.s32.totalorder %s53, 1
      %s55 = scalar_select %p54, 0, %s53
      %s56 = sadd.s32 1, %s47
      %s57 = scalar_select %p54, %s56, %s47
      %p58 = scmp.ge.s32.totalorder %s57, 2
      %s59 = scalar_select %p58, 0, %s57
      %s60 = ssub.s32 %s47, %s59
      %s61 = ssub.s32 %s48, %s55
      %s62 = sor.u32 %s60, %s61
      %p63 = scmp.eq.s32.totalorder %s62, 0
      %s65 = sadd.s32 %s64, 1
      %s66 = scalar_select %p63, %s64, %s65
      %p69 = pneg %p63
      %p70 = scmp.eq.s32.totalorder %s40, 1
      %p71 = por %p69, %p70
      %p72 = scmp.ne.s32.totalorder %s64, %s67
      %p73 = scmp.eq.s32.totalorder %s40, 0
      %p74 = por %p72, %p73
      %p75 = scmp.ne.s32.totalorder %s64, %s67
      %p76 = scmp.eq.s32.totalorder %s45, 1
      %p77 = por %p75, %p76
      %p78 = scmp.ne.s32.totalorder %s67, %s68
      %p79 = scmp.eq.s32.totalorder %s45, 0
      %p80 = por %p78, %p79
      %p81 = scmp.ne.s32.totalorder %s67, %s68
      %p82 = scmp.eq.s32.totalorder %s46, 1
      %p83 = por %p81, %p82
      %p85 = scmp.ne.s32.totalorder %s68, %s84
      %p86 = scmp.eq.s32.totalorder %s46, 0
      %p87 = por %p85, %p86
      %s88 = ssub.s32 %s47, %s59
      %p89 = scmp.eq.s32.totalorder %s88, 0
      %s91 = sadd.s32 %s90, 1
      %s92 = scalar_select %p89, %s90, %s91
      %p95 = pneg %p89
      %p96 = scmp.eq.s32.totalorder %s40, 1
      %p97 = por %p95, %p96
      %p98 = scmp.ne.s32.totalorder %s90, %s93
      %p99 = scmp.eq.s32.totalorder %s40, 0
      %p100 = por %p98, %p99
      %p101 = scmp.ne.s32.totalorder %s90, %s93
      %p102 = scmp.eq.s32.totalorder %s45, 1
      %p103 = por %p101, %p102
      %p104 = scmp.ne.s32.totalorder %s93, %s94
      %p105 = scmp.eq.s32.totalorder %s45, 0
      %p106 = por %p104, %p105
      %p107 = scmp.ne.s32.totalorder %s93, %s94
      %p108 = scmp.eq.s32.totalorder %s46, 1
      %p109 = por %p107, %p108
      %p111 = scmp.ne.s32.totalorder %s94, %s110
      %p112 = scmp.eq.s32.totalorder %s46, 0
      %p113 = por %p111, %p112
      %s114 = ssub.s32 %s47, %s59
      %p115 = scmp.eq.s32.totalorder %s114, 0
      %s117 = sadd.s32 %s116, 1
      %s118 = scalar_select %p115, %s116, %s117
      %p121 = pneg %p115
      %p122 = scmp.eq.s32.totalorder %s40, 1
      %p123 = por %p121, %p122
      %p124 = scmp.ne.s32.totalorder %s116, %s119
      %p125 = scmp.eq.s32.totalorder %s40, 0
      %p126 = por %p124, %p125
      %p127 = scmp.ne.s32.totalorder %s116, %s119
      %p128 = scmp.eq.s32.totalorder %s45, 1
      %p129 = por %p127, %p128
      %p130 = scmp.ne.s32.totalorder %s119, %s120
      %p131 = scmp.eq.s32.totalorder %s45, 0
      %p132 = por %p130, %p131
      %p133 = scmp.ne.s32.totalorder %s119, %s120
      %p134 = scmp.eq.s32.totalorder %s46, 1
      %p135 = por %p133, %p134
      %p137 = scmp.ne.s32.totalorder %s120, %s136
      %p138 = scmp.eq.s32.totalorder %s46, 0
      %p139 = por %p137, %p138
      %s141 = sadd.s32 %s140, 1
      %p144 = scmp.eq.s32.totalorder %s40, 1
      %p145 = scmp.ne.s32.totalorder %s140, %s142
      %p146 = scmp.eq.s32.totalorder %s40, 0
      %p147 = por %p145, %p146
      %p148 = scmp.ne.s32.totalorder %s140, %s142
      %p149 = scmp.eq.s32.totalorder %s45, 1
      %p150 = por %p148, %p149
      %p151 = scmp.ne.s32.totalorder %s142, %s143
      %p152 = scmp.eq.s32.totalorder %s45, 0
      %p153 = por %p151, %p152
      %p154 = scmp.ne.s32.totalorder %s142, %s143
      %p155 = scmp.eq.s32.totalorder %s46, 1
      %p156 = por %p154, %p155
      %p158 = scmp.ne.s32.totalorder %s143, %s157
      %p159 = scmp.eq.s32.totalorder %s46, 0
      %p160 = por %p158, %p159
      %s162 = sadd.s32 %s161, 1
      %p165 = scmp.eq.s32.totalorder %s40, 1
      %p166 = scmp.ne.s32.totalorder %s161, %s163
      %p167 = scmp.eq.s32.totalorder %s40, 0
      %p168 = por %p166, %p167
      %p169 = scmp.ne.s32.totalorder %s161, %s163
      %p170 = scmp.eq.s32.totalorder %s45, 1
      %p171 = por %p169, %p170
      %p172 = scmp.ne.s32.totalorder %s163, %s164
      %p173 = scmp.eq.s32.totalorder %s45, 0
      %p174 = por %p172, %p173
      %p175 = scmp.ne.s32.totalorder %s163, %s164
      %p176 = scmp.eq.s32.totalorder %s46, 1
      %p177 = por %p175, %p176
      %p179 = scmp.ne.s32.totalorder %s164, %s178
      %p180 = scmp.eq.s32.totalorder %s46, 0
      %p181 = por %p179, %p180
      %s183 = sadd.s32 %s182, 1
      %p186 = scmp.eq.s32.totalorder %s40, 1
      %p187 = scmp.ne.s32.totalorder %s182, %s184
      %p188 = scmp.eq.s32.totalorder %s40, 0
      %p189 = por %p187, %p188
      %p190 = scmp.ne.s32.totalorder %s182, %s184
      %p191 = scmp.eq.s32.totalorder %s45, 1
      %p192 = por %p190, %p191
      %p193 = scmp.ne.s32.totalorder %s184, %s185
      %p194 = scmp.eq.s32.totalorder %s45, 0
      %p195 = por %p193, %p194
      %p196 = scmp.ne.s32.totalorder %s184, %s185
      %p197 = scmp.eq.s32.totalorder %s46, 1
      %p198 = por %p196, %p197
      %p200 = scmp.ne.s32.totalorder %s185, %s199
      %p201 = scmp.eq.s32.totalorder %s46, 0
      %p202 = por %p200, %p201
      %s204 = sadd.s32 %s203, 1
      %p207 = scmp.eq.s32.totalorder %s40, 1
      %p208 = scmp.ne.s32.totalorder %s203, %s205
      %p209 = scmp.eq.s32.totalorder %s40, 0
      %p210 = por %p208, %p209
      %p211 = scmp.ne.s32.totalorder %s203, %s205
      %p212 = scmp.eq.s32.totalorder %s45, 1
      %p213 = por %p211, %p212
      %p214 = scmp.ne.s32.totalorder %s205, %s206
      %p215 = scmp.eq.s32.totalorder %s45, 0
      %p216 = por %p214, %p215
      %p217 = scmp.ne.s32.totalorder %s205, %s206
      %p218 = scmp.eq.s32.totalorder %s46, 1
      %p219 = por %p217, %p218
      %p221 = scmp.ne.s32.totalorder %s206, %s220
      %p222 = scmp.eq.s32.totalorder %s46, 0
      %p223 = por %p221, %p222
      %s225 = sadd.s32 %s224, 1
      %p228 = scmp.eq.s32.totalorder %s40, 1
      %p229 = scmp.ne.s32.totalorder %s224, %s226
      %p230 = scmp.eq.s32.totalorder %s40, 0
      %p231 = por %p229, %p230
      %p232 = scmp.ne.s32.totalorder %s224, %s226
      %p233 = scmp.eq.s32.totalorder %s45, 1
      %p234 = por %p232, %p233
      %p235 = scmp.ne.s32.totalorder %s226, %s227
      %p236 = scmp.eq.s32.totalorder %s45, 0
      %p237 = por %p235, %p236
      %p238 = scmp.ne.s32.totalorder %s226, %s227
      %p239 = scmp.eq.s32.totalorder %s46, 1
      %p240 = por %p238, %p239
      %p242 = scmp.ne.s32.totalorder %s227, %s241
      %p243 = scmp.eq.s32.totalorder %s46, 0
      %p244 = por %p242, %p243
      %s246 = sadd.s32 %s245, 1
      %p249 = scmp.eq.s32.totalorder %s40, 1
      %p250 = scmp.ne.s32.totalorder %s245, %s247
      %p251 = scmp.eq.s32.totalorder %s40, 0
      %p252 = por %p250, %p251
      %p253 = scmp.ne.s32.totalorder %s245, %s247
      %p254 = scmp.eq.s32.totalorder %s45, 1
      %p255 = por %p253, %p254
      %p256 = scmp.ne.s32.totalorder %s247, %s248
      %p257 = scmp.eq.s32.totalorder %s45, 0
      %p258 = por %p256, %p257
      %p259 = scmp.ne.s32.totalorder %s247, %s248
      %p260 = scmp.eq.s32.totalorder %s46, 1
      %p261 = por %p259, %p260
      %p263 = scmp.ne.s32.totalorder %s248, %s262
      %p264 = scmp.eq.s32.totalorder %s46, 0
      %p265 = por %p263, %p264
      %s267 = sadd.s32 %s266, 1
      %p270 = scmp.eq.s32.totalorder %s40, 1
      %p271 = scmp.ne.s32.totalorder %s266, %s268
      %p272 = scmp.eq.s32.totalorder %s40, 0
      %p273 = por %p271, %p272
      %p274 = scmp.ne.s32.totalorder %s266, %s268
      %p275 = scmp.eq.s32.totalorder %s45, 1
      %p276 = por %p274, %p275
      %p277 = scmp.ne.s32.totalorder %s268, %s269
      %p278 = scmp.eq.s32.totalorder %s45, 0
      %p279 = por %p277, %p278
      %p280 = scmp.ne.s32.totalorder %s268, %s269
      %p281 = scmp.eq.s32.totalorder %s46, 1
      %p282 = por %p280, %p281
      %p284 = scmp.ne.s32.totalorder %s269, %s283
      %p285 = scmp.eq.s32.totalorder %s46, 0
      %p286 = por %p284, %p285
      %s288 = sadd.s32 %s287, 1
      %p291 = scmp.eq.s32.totalorder %s40, 1
      %p292 = scmp.ne.s32.totalorder %s287, %s289
      %p293 = scmp.eq.s32.totalorder %s40, 0
      %p294 = por %p292, %p293
      %p295 = scmp.ne.s32.totalorder %s287, %s289
      %p296 = scmp.eq.s32.totalorder %s45, 1
      %p297 = por %p295, %p296
      %p298 = scmp.ne.s32.totalorder %s289, %s290
      %p299 = scmp.eq.s32.totalorder %s45, 0
      %p300 = por %p298, %p299
      %p301 = scmp.ne.s32.totalorder %s289, %s290
      %p302 = scmp.eq.s32.totalorder %s46, 1
      %p303 = por %p301, %p302
      %p305 = scmp.ne.s32.totalorder %s290, %s304
      %p306 = scmp.eq.s32.totalorder %s46, 0
      %p307 = por %p305, %p306
      %s309 = sadd.s32 %s308, 1
      %p312 = scmp.eq.s32.totalorder %s40, 1
      %p313 = scmp.ne.s32.totalorder %s308, %s310
      %p314 = scmp.eq.s32.totalorder %s40, 0
      %p315 = por %p313, %p314
      %p316 = scmp.ne.s32.totalorder %s308, %s310
      %p317 = scmp.eq.s32.totalorder %s45, 1
      %p318 = por %p316, %p317
      %p319 = scmp.ne.s32.totalorder %s310, %s311
      %p320 = scmp.eq.s32.totalorder %s45, 0
      %p321 = por %p319, %p320
      %p322 = scmp.ne.s32.totalorder %s310, %s311
      %p323 = scmp.eq.s32.totalorder %s46, 1
      %p324 = por %p322, %p323
      %p326 = scmp.ne.s32.totalorder %s311, %s325
      %p327 = scmp.eq.s32.totalorder %s46, 0
      %p328 = por %p326, %p327
      %s330 = sadd.s32 %s329, 1
      %p333 = scmp.eq.s32.totalorder %s40, 1
      %p334 = scmp.ne.s32.totalorder %s329, %s331
      %p335 = scmp.eq.s32.totalorder %s40, 0
      %p336 = por %p334, %p335
      %p337 = scmp.ne.s32.totalorder %s329, %s331
      %p338 = scmp.eq.s32.totalorder %s45, 1
      %p339 = por %p337, %p338
      %p340 = scmp.ne.s32.totalorder %s331, %s332
      %p341 = scmp.eq.s32.totalorder %s45, 0
      %p342 = por %p340, %p341
      %p343 = scmp.ne.s32.totalorder %s331, %s332
      %p344 = scmp.eq.s32.totalorder %s46, 1
      %p345 = por %p343, %p344
      %p347 = scmp.ne.s32.totalorder %s332, %s346
      %p348 = scmp.eq.s32.totalorder %s46, 0
      %p349 = por %p347, %p348
      %s351 = sadd.s32 %s350, 1
      %p354 = scmp.eq.s32.totalorder %s40, 1
      %p355 = scmp.ne.s32.totalorder %s350, %s352
      %p356 = scmp.eq.s32.totalorder %s40, 0
      %p357 = por %p355, %p356
      %p358 = scmp.ne.s32.totalorder %s350, %s352
      %p359 = scmp.eq.s32.totalorder %s45, 1
      %p360 = por %p358, %p359
      %p361 = scmp.ne.s32.totalorder %s352, %s353
      %p362 = scmp.eq.s32.totalorder %s45, 0
      %p363 = por %p361, %p362
      %p364 = scmp.ne.s32.totalorder %s352, %s353
      %p365 = scmp.eq.s32.totalorder %s46, 1
      %p366 = por %p364, %p365
      %p368 = scmp.ne.s32.totalorder %s353, %s367
      %p369 = scmp.eq.s32.totalorder %s46, 0
      %p370 = por %p368, %p369
      %s372 = sadd.s32 %s371, 1
      %p375 = scmp.eq.s32.totalorder %s40, 1
      %p376 = scmp.ne.s32.totalorder %s371, %s373
      %p377 = scmp.eq.s32.totalorder %s40, 0
      %p378 = por %p376, %p377
      %p379 = scmp.ne.s32.totalorder %s371, %s373
      %p380 = scmp.eq.s32.totalorder %s45, 1
      %p381 = por %p379, %p380
      %p382 = scmp.ne.s32.totalorder %s373, %s374
      %p383 = scmp.eq.s32.totalorder %s45, 0
      %p384 = por %p382, %p383
      %p385 = scmp.ne.s32.totalorder %s373, %s374
      %p386 = scmp.eq.s32.totalorder %s46, 1
      %p387 = por %p385, %p386
      %p389 = scmp.ne.s32.totalorder %s374, %s388
      %p390 = scmp.eq.s32.totalorder %s46, 0
      %p391 = por %p389, %p390
      %s393 = sadd.s32 %s392, 1
      %p396 = scmp.eq.s32.totalorder %s40, 1
      %p397 = scmp.ne.s32.totalorder %s392, %s394
      %p398 = scmp.eq.s32.totalorder %s40, 0
      %p399 = por %p397, %p398
      %p400 = scmp.ne.s32.totalorder %s392, %s394
      %p401 = scmp.eq.s32.totalorder %s45, 1
      %p402 = por %p400, %p401
      %p403 = scmp.ne.s32.totalorder %s394, %s395
      %p404 = scmp.eq.s32.totalorder %s45, 0
      %p405 = por %p403, %p404
      %p406 = scmp.ne.s32.totalorder %s394, %s395
      %p407 = scmp.eq.s32.totalorder %s46, 1
      %p408 = por %p406, %p407
      %p410 = scmp.ne.s32.totalorder %s395, %s409
      %p411 = scmp.eq.s32.totalorder %s46, 0
      %p412 = por %p410, %p411
      %s414 = sadd.s32 %s413, 1
      %p417 = scmp.eq.s32.totalorder %s40, 1
      %p418 = scmp.ne.s32.totalorder %s413, %s415
      %p419 = scmp.eq.s32.totalorder %s40, 0
      %p420 = por %p418, %p419
      %p421 = scmp.ne.s32.totalorder %s413, %s415
      %p422 = scmp.eq.s32.totalorder %s45, 1
      %p423 = por %p421, %p422
      %p424 = scmp.ne.s32.totalorder %s415, %s416
      %p425 = scmp.eq.s32.totalorder %s45, 0
      %p426 = por %p424, %p425
      %p427 = scmp.ne.s32.totalorder %s415, %s416
      %p428 = scmp.eq.s32.totalorder %s46, 1
      %p429 = por %p427, %p428
      %p431 = scmp.ne.s32.totalorder %s416, %s430
      %p432 = scmp.eq.s32.totalorder %s46, 0
      %p433 = por %p431, %p432
      %s435 = sadd.s32 %s434, 1
      %p438 = scmp.eq.s32.totalorder %s40, 1
      %p439 = scmp.ne.s32.totalorder %s434, %s436
      %p440 = scmp.eq.s32.totalorder %s40, 0
      %p441 = por %p439, %p440
      %p442 = scmp.ne.s32.totalorder %s434, %s436
      %p443 = scmp.eq.s32.totalorder %s45, 1
      %p444 = por %p442, %p443
      %p445 = scmp.ne.s32.totalorder %s436, %s437
      %p446 = scmp.eq.s32.totalorder %s45, 0
      %p447 = por %p445, %p446
      %p448 = scmp.ne.s32.totalorder %s436, %s437
      %p449 = scmp.eq.s32.totalorder %s46, 1
      %p450 = por %p448, %p449
      %p452 = scmp.ne.s32.totalorder %s437, %s451
      %p453 = scmp.eq.s32.totalorder %s46, 0
      %p454 = por %p452, %p453
      %s456 = sadd.s32 %s455, 1
      %p459 = scmp.eq.s32.totalorder %s40, 1
      %p460 = scmp.ne.s32.totalorder %s455, %s457
      %p461 = scmp.eq.s32.totalorder %s40, 0
      %p462 = por %p460, %p461
      %p463 = scmp.ne.s32.totalorder %s455, %s457
      %p464 = scmp.eq.s32.totalorder %s45, 1
      %p465 = por %p463, %p464
      %p466 = scmp.ne.s32.totalorder %s457, %s458
      %p467 = scmp.eq.s32.totalorder %s45, 0
      %p468 = por %p466, %p467
      %p469 = scmp.ne.s32.totalorder %s457, %s458
      %p470 = scmp.eq.s32.totalorder %s46, 1
      %p471 = por %p469, %p470
      %p473 = scmp.ne.s32.totalorder %s458, %s472
      %p474 = scmp.eq.s32.totalorder %s46, 0
      %p475 = por %p473, %p474
      %s476 = ssub.s32 %s47, %s59
      %s477 = ssub.s32 %s48, %s55
      %s478 = sor.u32 %s476, %s477
      %p479 = scmp.eq.s32.totalorder %s478, 0
      %s481 = sadd.s32 %s480, 1
      %s482 = scalar_select %p479, %s480, %s481
      %p485 = pneg %p479
      %p486 = scmp.eq.s32.totalorder %s40, 1
      %p487 = por %p485, %p486
      %p488 = scmp.ne.s32.totalorder %s480, %s483
      %p489 = scmp.eq.s32.totalorder %s40, 0
      %p490 = por %p488, %p489
      %p491 = scmp.ne.s32.totalorder %s480, %s483
      %p492 = scmp.eq.s32.totalorder %s45, 1
      %p493 = por %p491, %p492
      %p494 = scmp.ne.s32.totalorder %s483, %s484
      %p495 = scmp.eq.s32.totalorder %s45, 0
      %p496 = por %p494, %p495
      %p497 = scmp.ne.s32.totalorder %s483, %s484
      %p498 = scmp.eq.s32.totalorder %s46, 1
      %p499 = por %p497, %p498
      %p501 = scmp.ne.s32.totalorder %s484, %s500
      %p502 = scmp.eq.s32.totalorder %s46, 0
      %p503 = por %p501, %p502
      %s504 = ssub.s32 %s47, %s59
      %s505 = ssub.s32 %s48, %s55
      %s506 = sor.u32 %s504, %s505
      %p507 = scmp.eq.s32.totalorder %s506, 0
      %s509 = sadd.s32 %s508, 1
      %s510 = scalar_select %p507, %s508, %s509
      %p513 = pneg %p507
      %p514 = scmp.eq.s32.totalorder %s40, 1
      %p515 = por %p513, %p514
      %p516 = scmp.ne.s32.totalorder %s508, %s511
      %p517 = scmp.eq.s32.totalorder %s40, 0
      %p518 = por %p516, %p517
      %p519 = scmp.ne.s32.totalorder %s508, %s511
      %p520 = scmp.eq.s32.totalorder %s45, 1
      %p521 = por %p519, %p520
      %p522 = scmp.ne.s32.totalorder %s511, %s512
      %p523 = scmp.eq.s32.totalorder %s45, 0
      %p524 = por %p522, %p523
      %p525 = scmp.ne.s32.totalorder %s511, %s512
      %p526 = scmp.eq.s32.totalorder %s46, 1
      %p527 = por %p525, %p526
      %p529 = scmp.ne.s32.totalorder %s512, %s528
      %p530 = scmp.eq.s32.totalorder %s46, 0
      %p531 = por %p529, %p530
      %p532 = scmp.le.s32.totalorder 1, %s40
      %p533 = scmp.lt.s32.totalorder %s40, 3
      %p534 = pnand %p532, %p533
      %p535 = pneg %p534
      // Predicated region
      $region9: #{tpu_custom_call.1} parent=5 // pred_check
        _
      $region10: #{tpu_custom_call.1} parent=5 // pred_check_branch
        %537 = sbr.rel (%p534) target = $region12
      $region11: #{tpu_custom_call.1} parent=5 // pred_region
        %s538 = ssub.s32 %s40, 1
        // Predicated region
        $region13: #{tpu_custom_call.1} parent=11 // pred_check
          %p539 = pneg %p153
        $region14: #{tpu_custom_call.1} parent=11 // pred_check_branch
          %541 = sbr.rel (%p539) target = $region16
        $region15: #{tpu_custom_call.1} parent=11 // pred_region
          _
        $region16: #{tpu_custom_call.1} parent=11 // pred_fallthru
          _
        // Predicated region
        $region17: #{tpu_custom_call.1} parent=11 // pred_check
          %p542 = pneg %p174
        $region18: #{tpu_custom_call.1} parent=11 // pred_check_branch
          %544 = sbr.rel (%p542) target = $region20
        $region19: #{tpu_custom_call.1} parent=11 // pred_region
          _
        $region20: #{tpu_custom_call.1} parent=11 // pred_fallthru
          _
        // Predicated region
        $region21: #{tpu_custom_call.1} parent=11 // pred_check
          %p545 = pneg %p195
        $region22: #{tpu_custom_call.1} parent=11 // pred_check_branch
          %547 = sbr.rel (%p545) target = $region24
        $region23: #{tpu_custom_call.1} parent=11 // pred_region
          _
        $region24: #{tpu_custom_call.1} parent=11 // pred_fallthru
          _
        // Predicated region
        $region25: #{tpu_custom_call.1} parent=11 // pred_check
          %p548 = pneg %p216
        $region26: #{tpu_custom_call.1} parent=11 // pred_check_branch
          %550 = sbr.rel (%p548) target = $region28
        $region27: #{tpu_custom_call.1} parent=11 // pred_region
          _
        $region28: #{tpu_custom_call.1} parent=11 // pred_fallthru
          _
        // Predicated region
        $region29: #{tpu_custom_call.1} parent=11 // pred_check
          %p551 = pneg %p237
        $region30: #{tpu_custom_call.1} parent=11 // pred_check_branch
          %553 = sbr.rel (%p551) target = $region32
        $region31: #{tpu_custom_call.1} parent=11 // pred_region
          _
        $region32: #{tpu_custom_call.1} parent=11 // pred_fallthru
          _
        // Predicated region
        $region33: #{tpu_custom_call.1} parent=11 // pred_check
          %p554 = pneg %p258
        $region34: #{tpu_custom_call.1} parent=11 // pred_check_branch
          %556 = sbr.rel (%p554) target = $region36
        $region35: #{tpu_custom_call.1} parent=11 // pred_region
          _
        $region36: #{tpu_custom_call.1} parent=11 // pred_fallthru
          _
        // Predicated region
        $region37: #{tpu_custom_call.1} parent=11 // pred_check
          %p557 = pneg %p279
        $region38: #{tpu_custom_call.1} parent=11 // pred_check_branch
          %559 = sbr.rel (%p557) target = $region40
        $region39: #{tpu_custom_call.1} parent=11 // pred_region
          %561 = vsyncadd [#allocation9], 0
          %s562 = sshll.u32 %s9, 4
          %s563 = int_to_ptr.hbm [resolvable:$true] %s562
          %s564 = sshll.u32 [#allocation8], 4
          %s565 = int_to_ptr.vmem [resolvable:$true] %s564
          %570 = dma.hbm_to_vmem [thread:$0]  %s563, 512, %s565, [#allocation9], 128, 128, 8
        $region40: #{tpu_custom_call.1} parent=11 // pred_fallthru
          _
        // Predicated region
        $region41: #{tpu_custom_call.1} parent=11 // pred_check
          %p571 = pneg %p300
        $region42: #{tpu_custom_call.1} parent=11 // pred_check_branch
          %573 = sbr.rel (%p571) target = $region44
        $region43: #{tpu_custom_call.1} parent=11 // pred_region
          _
        $region44: #{tpu_custom_call.1} parent=11 // pred_fallthru
          _
        // Predicated region
        $region45: #{tpu_custom_call.1} parent=11 // pred_check
          %p574 = pneg %p321
        $region46: #{tpu_custom_call.1} parent=11 // pred_check_branch
          %576 = sbr.rel (%p574) target = $region48
        $region47: #{tpu_custom_call.1} parent=11 // pred_region
          %578 = vsyncadd [#allocation9], 0
          %s579 = sshll.u32 %s11, 4
          %s580 = int_to_ptr.hbm [resolvable:$true] %s579
          %s581 = sshll.u32 [#allocation10], 4
          %s582 = int_to_ptr.vmem [resolvable:$true] %s581
          %587 = dma.hbm_to_vmem [thread:$0]  %s580, 512, %s582, [#allocation9], 128, 128, 8
        $region48: #{tpu_custom_call.1} parent=11 // pred_fallthru
          _
        // Predicated region
        $region49: #{tpu_custom_call.1} parent=11 // pred_check
          %p588 = pneg %p342
        $region50: #{tpu_custom_call.1} parent=11 // pred_check_branch
          %590 = sbr.rel (%p588) target = $region52
        $region51: #{tpu_custom_call.1} parent=11 // pred_region
          _
        $region52: #{tpu_custom_call.1} parent=11 // pred_fallthru
          _
        // Predicated region
        $region53: #{tpu_custom_call.1} parent=11 // pred_check
          %p591 = pneg %p363
        $region54: #{tpu_custom_call.1} parent=11 // pred_check_branch
          %593 = sbr.rel (%p591) target = $region56
        $region55: #{tpu_custom_call.1} parent=11 // pred_region
          _
        $region56: #{tpu_custom_call.1} parent=11 // pred_fallthru
          _
        // Predicated region
        $region57: #{tpu_custom_call.1} parent=11 // pred_check
          %p594 = pneg %p384
        $region58: #{tpu_custom_call.1} parent=11 // pred_check_branch
          %596 = sbr.rel (%p594) target = $region60
        $region59: #{tpu_custom_call.1} parent=11 // pred_region
          _
        $region60: #{tpu_custom_call.1} parent=11 // pred_fallthru
          _
        // Predicated region
        $region61: #{tpu_custom_call.1} parent=11 // pred_check
          %p597 = pneg %p405
        $region62: #{tpu_custom_call.1} parent=11 // pred_check_branch
          %599 = sbr.rel (%p597) target = $region64
        $region63: #{tpu_custom_call.1} parent=11 // pred_region
          _
        $region64: #{tpu_custom_call.1} parent=11 // pred_fallthru
          _
        // Predicated region
        $region65: #{tpu_custom_call.1} parent=11 // pred_check
          %p600 = pneg %p426
        $region66: #{tpu_custom_call.1} parent=11 // pred_check_branch
          %602 = sbr.rel (%p600) target = $region68
        $region67: #{tpu_custom_call.1} parent=11 // pred_region
          _
        $region68: #{tpu_custom_call.1} parent=11 // pred_fallthru
          _
        // Predicated region
        $region69: #{tpu_custom_call.1} parent=11 // pred_check
          %p603 = pneg %p447
        $region70: #{tpu_custom_call.1} parent=11 // pred_check_branch
          %605 = sbr.rel (%p603) target = $region72
        $region71: #{tpu_custom_call.1} parent=11 // pred_region
          _
        $region72: #{tpu_custom_call.1} parent=11 // pred_fallthru
          _
        // Predicated region
        $region73: #{tpu_custom_call.1} parent=11 // pred_check
          %p606 = pneg %p468
        $region74: #{tpu_custom_call.1} parent=11 // pred_check_branch
          %608 = sbr.rel (%p606) target = $region76
        $region75: #{tpu_custom_call.1} parent=11 // pred_region
          _
        $region76: #{tpu_custom_call.1} parent=11 // pred_fallthru
          _
      $region12: #{tpu_custom_call.1} parent=5 // pred_fallthru
        _
      %p609 = scmp.lt.s32.totalorder %s40, 2
      // Predicated region
      $region77: #{tpu_custom_call.1} parent=5 // pred_check
        %p610 = pneg %p609
      $region78: #{tpu_custom_call.1} parent=5 // pred_check_branch
        %612 = sbr.rel (%p610) target = $region80
      $region79: #{tpu_custom_call.1} parent=5 // pred_region
        // Predicated region
        $region81: #{tpu_custom_call.1} parent=79 // pred_check
          %p613 = pneg %p74
        $region82: #{tpu_custom_call.1} parent=79 // pred_check_branch
          %615 = sbr.rel (%p613) target = $region84
        $region83: #{tpu_custom_call.1} parent=79 // pred_region
          %s616 = sand.u32 %s64, 1
          %s617 = scalar_lea.sflag [#allocation3], %s616
          %s618 = sand.u32 %s64, 1
          %s619 = smul.addr %s618, 8
          %s620 = scalar_lea.vmem [#allocation2], %s619
          %622 = vsyncadd %s617, 0
          %s623 = sadd.s32 %s48, %s47
          %s624 = smul.addr %s623, 8
          %s625 = scalar_lea.hbm %s0, %s624
          %s627 = sshll.u32 %s625, 4
          %s628 = int_to_ptr.hbm [resolvable:$true] %s627
          %s629 = sshll.u32 %s620, 4
          %s630 = int_to_ptr.vmem [resolvable:$true] %s629
          %632 = dma.hbm_to_vmem [thread:$0]  %s628, 128, %s630, %s617
        $region84: #{tpu_custom_call.1} parent=79 // pred_fallthru
          _
        // Predicated region
        $region85: #{tpu_custom_call.1} parent=79 // pred_check
          %p633 = pneg %p100
        $region86: #{tpu_custom_call.1} parent=79 // pred_check_branch
          %635 = sbr.rel (%p633) target = $region88
        $region87: #{tpu_custom_call.1} parent=79 // pred_region
          %s636 = sand.u32 %s40, 1
          %s637 = scalar_lea.sflag [#allocation6], %s636
          %s638 = sand.u32 %s90, 1
          %s639 = smul.addr %s638, 8
          %s640 = scalar_lea.vmem [#allocation5], %s639
          %642 = vsyncadd %s637, 0
          %s643 = smul.addr %s47, 8
          %s644 = scalar_lea.hbm %s1, %s643
          %s646 = sshll.u32 %s644, 4
          %s647 = int_to_ptr.hbm [resolvable:$true] %s646
          %s648 = sshll.u32 %s640, 4
          %s649 = int_to_ptr.vmem [resolvable:$true] %s648
          %651 = dma.hbm_to_vmem [thread:$0]  %s647, 128, %s649, %s637
        $region88: #{tpu_custom_call.1} parent=79 // pred_fallthru
          _
        // Predicated region
        $region89: #{tpu_custom_call.1} parent=79 // pred_check
          %p652 = pneg %p126
        $region90: #{tpu_custom_call.1} parent=79 // pred_check_branch
          %654 = sbr.rel (%p652) target = $region92
        $region91: #{tpu_custom_call.1} parent=79 // pred_region
          %s655 = sand.u32 %s40, 1
          %s656 = scalar_lea.sflag [#allocation6], %s655
          %s657 = sand.u32 %s116, 1
          %s658 = scalar_lea.vmem [#allocation7], %s657
          %660 = vsyncadd %s656, 0
          %s661 = scalar_lea.hbm %s2, %s47
          %s663 = sshll.u32 %s661, 4
          %s664 = int_to_ptr.hbm [resolvable:$true] %s663
          %s665 = sshll.u32 %s658, 4
          %s666 = int_to_ptr.vmem [resolvable:$true] %s665
          %668 = dma.hbm_to_vmem [thread:$0]  %s664, 16, %s666, %s656
        $region92: #{tpu_custom_call.1} parent=79 // pred_fallthru
          _
      $region80: #{tpu_custom_call.1} parent=5 // pred_fallthru
        _
      %p669 = scmp.le.s32.totalorder 1, %s40
      %p670 = scmp.lt.s32.totalorder %s40, 3
      %p671 = pnand %p669, %p670
      %p672 = pneg %p671
      // Predicated region
      $region93: #{tpu_custom_call.1} parent=5 // pred_check
        _
      $region94: #{tpu_custom_call.1} parent=5 // pred_check_branch
        %674 = sbr.rel (%p671) target = $region96
      $region95: #{tpu_custom_call.1} parent=5 // pred_region
        %s675 = ssub.s32 %s40, 1
        %s676 = sand.u32 %s67, 1
        %s677 = scalar_lea.sflag [#allocation3], %s676
        %s678 = sand.u32 %s67, 1
        %s679 = smul.addr %s678, 8
        %s680 = scalar_lea.vmem [#allocation2], %s679
        // Predicated region
        $region97: #{tpu_custom_call.1} parent=95 // pred_check
          %p681 = pneg %p80
        $region98: #{tpu_custom_call.1} parent=95 // pred_check_branch
          %683 = sbr.rel (%p681) target = $region100
        $region99: #{tpu_custom_call.1} parent=95 // pred_region
          %685 = dma.done %s677, 128
        $region100: #{tpu_custom_call.1} parent=95 // pred_fallthru
          _
        %s686 = sand.u32 %s45, 1
        %s687 = scalar_lea.sflag [#allocation6], %s686
        %s688 = sand.u32 %s93, 1
        %s689 = smul.addr %s688, 8
        %s690 = scalar_lea.vmem [#allocation5], %s689
        // Predicated region
        $region101: #{tpu_custom_call.1} parent=95 // pred_check
          %p691 = pneg %p106
        $region102: #{tpu_custom_call.1} parent=95 // pred_check_branch
          %693 = sbr.rel (%p691) target = $region104
        $region103: #{tpu_custom_call.1} parent=95 // pred_region
          %695 = dma.done %s687, 128
        $region104: #{tpu_custom_call.1} parent=95 // pred_fallthru
          _
        %s696 = sand.u32 %s45, 1
        %s697 = scalar_lea.sflag [#allocation6], %s696
        %s698 = sand.u32 %s119, 1
        %s699 = scalar_lea.vmem [#allocation7], %s698
        // Predicated region
        $region105: #{tpu_custom_call.1} parent=95 // pred_check
          %p700 = pneg %p132
        $region106: #{tpu_custom_call.1} parent=95 // pred_check_branch
          %702 = sbr.rel (%p700) target = $region108
        $region107: #{tpu_custom_call.1} parent=95 // pred_region
          %704 = dma.done %s697, 16
        $region108: #{tpu_custom_call.1} parent=95 // pred_fallthru
          _
        // Predicated region
        $region109: #{tpu_custom_call.1} parent=95 // pred_check
          %p705 = pneg %p279
        $region110: #{tpu_custom_call.1} parent=95 // pred_check_branch
          %707 = sbr.rel (%p705) target = $region112
        $region111: #{tpu_custom_call.1} parent=95 // pred_region
          %709 = dma.done [#allocation9], 512
        $region112: #{tpu_custom_call.1} parent=95 // pred_fallthru
          _
        // Predicated region
        $region113: #{tpu_custom_call.1} parent=95 // pred_check
          %p710 = pneg %p321
        $region114: #{tpu_custom_call.1} parent=95 // pred_check_branch
          %712 = sbr.rel (%p710) target = $region116
        $region115: #{tpu_custom_call.1} parent=95 // pred_region
          %714 = dma.done [#allocation9], 512
        $region116: #{tpu_custom_call.1} parent=95 // pred_fallthru
          _
        %s715 = sand.u32 %s67, 1
        %s716 = scalar_lea.sflag [#allocation3], %s715
        %s717 = sand.u32 %s67, 1
        %s718 = smul.addr %s717, 8
        %s719 = scalar_lea.vmem [#allocation2], %s718
        %p720 = pneg %p80
        %p721 = pneg %p77
        %s722 = sand.u32 %s45, 1
        %s723 = scalar_lea.sflag [#allocation6], %s722
        %s724 = sand.u32 %s93, 1
        %s725 = smul.addr %s724, 8
        %s726 = scalar_lea.vmem [#allocation5], %s725
        %p727 = pneg %p106
        %p728 = pneg %p103
        %s729 = sand.u32 %s45, 1
        %s730 = scalar_lea.sflag [#allocation6], %s729
        %s731 = sand.u32 %s119, 1
        %s732 = scalar_lea.vmem [#allocation7], %s731
        %p733 = pneg %p132
        %p734 = pneg %p129
        %p735 = pneg %p153
        %p736 = pneg %p150
        %p737 = pneg %p174
        %p738 = pneg %p171
        %p739 = pneg %p195
        %p740 = pneg %p192
        %p741 = pneg %p216
        %p742 = pneg %p213
        %p743 = pneg %p237
        %p744 = pneg %p234
        %p745 = pneg %p258
        %p746 = pneg %p255
        %p747 = pneg %p279
        %p748 = pneg %p276
        %p749 = pneg %p300
        %p750 = pneg %p297
        %p751 = pneg %p321
        %p752 = pneg %p318
        %p753 = pneg %p342
        %p754 = pneg %p339
        %p755 = pneg %p363
        %p756 = pneg %p360
        %p757 = pneg %p384
        %p758 = pneg %p381
        %p759 = pneg %p405
        %p760 = pneg %p402
        %p761 = pneg %p426
        %p762 = pneg %p423
        %p763 = pneg %p447
        %p764 = pneg %p444
        %p765 = pneg %p468
        %p766 = pneg %p465
        %p767 = pneg %p496
        %p768 = pneg %p493
        %s769 = sand.u32 %s483, 1
        %s770 = scalar_lea.sflag [#allocation4], %s769
        %s771 = sand.u32 %s483, 1
        %s772 = smul.addr %s771, 8
        %s773 = scalar_lea.vmem [#allocation11], %s772
        %p774 = pneg %p524
        %p775 = pneg %p521
        %s776 = sand.u32 %s511, 1
        %s777 = scalar_lea.sflag [#allocation13], %s776
        %s778 = sand.u32 %s511, 1
        %s779 = smul.addr %s778, 8
        %s780 = scalar_lea.vmem [#allocation12], %s779
        %v781 = vld [vmem:[%s680] sm:$0xff]
        %v782 = vld [vmem:[%s690] sm:$0xff]
        %v783 = vld [vmem:[%s699] sm:$0x1]
        %v784 = vld [vmem:[%s3] sm:$0xff]
        %v785 = vld [vmem:[%s3 + $0x8] sm:$0xff]
        %v786 = vld [vmem:[%s3 + $0x10] sm:$0xff]
        %v787 = vld [vmem:[%s3 + $0x18] sm:$0xff]
        %v788 = vld [vmem:[%s6] sm:$0x1]
        %v790 = vperm.slane %v788, 0
        %vm792 = vcmask 261120
        %v794 = vsel %vm792, %v781, 0
        %796 = vmatpush.msra.mxu0 0.0
        %797 = vmatpush.msra.mxu0 0.0
        %798 = vmatpush.msra.mxu0 0.0
        %799 = vmatpush.msra.mxu0 0.0
        %800 = vmatpush.msra.mxu0 0.0
        %801 = vmatpush.msra.mxu0 0.0
        %802 = vmatpush.msra.mxu0 0.0
        %803 = vmatpush.msra.mxu0 0.0
        %804 = vmatpush.msra.mxu0 0.0
        %805 = vmatpush.msra.mxu0 0.0
        %806 = vmatpush.msra.mxu0 0.0
        %807 = vmatpush.msra.mxu0 0.0
        %808 = vmatpush.msra.mxu0 %v787
        %809 = vmatpush.msra.mxu0 %v786
        %810 = vmatpush.msra.mxu0 %v785
        %811 = vmatpush.msra.mxu0 %v784
        %812 = vmatmul.f32.gmra.mxu0 %v794
        %v813 = vpop.f32.mrf.mxu0
        %v814 = vadd.f32 %v790, %v813
        %815 = vdwg.mxu0
        %v816 = vld [vmem:[%s4] sm:$0xff]
        %v817 = vld [vmem:[%s4 + $0x8] sm:$0xff]
        %v818 = vld [vmem:[%s4 + $0x10] sm:$0xff]
        %v819 = vld [vmem:[%s4 + $0x18] sm:$0xff]
        %v820 = vld [vmem:[%s7] sm:$0x1]
        %v822 = vperm.slane %v820, 0
        %v825 = vsel %vm792, %v782, 0
        %827 = vmatpush.msra.mxu0 0.0
        %828 = vmatpush.msra.mxu0 0.0
        %829 = vmatpush.msra.mxu0 0.0
        %830 = vmatpush.msra.mxu0 0.0
        %831 = vmatpush.msra.mxu0 0.0
        %832 = vmatpush.msra.mxu0 0.0
        %833 = vmatpush.msra.mxu0 0.0
        %834 = vmatpush.msra.mxu0 0.0
        %835 = vmatpush.msra.mxu0 0.0
        %836 = vmatpush.msra.mxu0 0.0
        %837 = vmatpush.msra.mxu0 0.0
        %838 = vmatpush.msra.mxu0 0.0
        %839 = vmatpush.msra.mxu0 %v819
        %840 = vmatpush.msra.mxu0 %v818
        %841 = vmatpush.msra.mxu0 %v817
        %842 = vmatpush.msra.mxu0 %v816
        %843 = vmatmul.f32.gmra.mxu0 %v825
        %v844 = vpop.f32.mrf.mxu0
        %v845 = vadd.f32 %v822, %v844
        %846 = vdwg.mxu0
        %v847 = vld [vmem:[%s5] sm:$0xff]
        %v848 = vld [vmem:[%s5 + $0x8] sm:$0xff]
        %v849 = vld [vmem:[%s5 + $0x10] sm:$0xff]
        %v850 = vld [vmem:[%s5 + $0x18] sm:$0xff]
        %v851 = vld [vmem:[%s8] sm:$0x1]
        %v853 = vperm.slane %v851, 0
        %855 = vmatpush.msra.mxu0 0.0
        %856 = vmatpush.msra.mxu0 0.0
        %857 = vmatpush.msra.mxu0 0.0
        %858 = vmatpush.msra.mxu0 0.0
        %859 = vmatpush.msra.mxu0 0.0
        %860 = vmatpush.msra.mxu0 0.0
        %861 = vmatpush.msra.mxu0 0.0
        %862 = vmatpush.msra.mxu0 0.0
        %863 = vmatpush.msra.mxu0 0.0
        %864 = vmatpush.msra.mxu0 0.0
        %865 = vmatpush.msra.mxu0 0.0
        %866 = vmatpush.msra.mxu0 0.0
        %867 = vmatpush.msra.mxu0 %v850
        %868 = vmatpush.msra.mxu0 %v849
        %869 = vmatpush.msra.mxu0 %v848
        %870 = vmatpush.msra.mxu0 %v847
        %871 = vmatmul.f32.gmra.mxu0 %v825
        %v872 = vpop.f32.mrf.mxu0
        %v873 = vadd.f32 %v853, %v872
        %874 = vdwg.mxu0
        %v875 = vmul.f32 %v814, 0.35355338
        %877 = vrot.lane.b32.xlu0 %v875, 120
        %v878 = vpop.permute.xlu0 %877
        %880 = vrot.lane.b32.xlu0 %v875, 112
        %v881 = vpop.permute.xlu0 %880
        %883 = vrot.lane.b32.xlu0 %v875, 104
        %v884 = vpop.permute.xlu0 %883
        %v886 = vrot.slane %v881, 4
        %vm887 = vcmask 1047556
        %v888 = vsel %vm887, %v886, %v875
        %v889 = vrot.slane %v875, 4
        %v890 = vsel %vm887, %v881, %v889
        %v892 = vunpack.c.l.s4 1983009808
        %v893 = vunpack.c.0.s8 %v892
        %v894 = vperm.slane %v888, %v893
        %v896 = vunpack.c.l.s4 1983009808
        %v897 = vunpack.c.0.s8 %v896
        %v898 = vperm.slane %v890, %v897
        %v899 = vrot.slane %v884, 4
        %v900 = vsel %vm887, %v899, %v878
        %v901 = vrot.slane %v878, 4
        %v902 = vsel %vm887, %v884, %v901
        %v904 = vunpack.c.l.s4 1983009808
        %v905 = vunpack.c.0.s8 %v904
        %v906 = vperm.slane %v900, %v905
        %v908 = vunpack.c.l.s4 1983009808
        %v909 = vunpack.c.0.s8 %v908
        %v910 = vperm.slane %v902, %v909
        %v911 = vrot.slane %v906, 4
        %v912 = vsel %vm887, %v911, %v894
        %v913 = vrot.slane %v894, 4
        %v914 = vsel %vm887, %v906, %v913
        %v916 = vunpack.c.l.s4 1934713408
        %v917 = vunpack.c.0.s8 %v916
        %v918 = vperm.slane %v912, %v917
        %v920 = vunpack.c.l.s4 1934713408
        %v921 = vunpack.c.0.s8 %v920
        %v922 = vperm.slane %v914, %v921
        %v923 = vrot.slane %v910, 4
        %v924 = vsel %vm887, %v923, %v898
        %v925 = vrot.slane %v898, 4
        %v926 = vsel %vm887, %v910, %v925
        %v928 = vunpack.c.l.s4 1934713408
        %v929 = vunpack.c.0.s8 %v928
        %v930 = vperm.slane %v924, %v929
        %v932 = vunpack.c.l.s4 1934713408
        %v933 = vunpack.c.0.s8 %v932
        %v934 = vperm.slane %v926, %v933
        %v935 = vrot.slane %v918, 4
        %v936 = vsel %vm887, 0.0, %v935
        %v937 = vrot.slane %v922, 4
        %v938 = vsel %vm887, 0.0, %v937
        %v939 = vrot.slane %v930, 4
        %v940 = vsel %vm887, 0.0, %v939
        %v941 = vrot.slane %v934, 4
        %v942 = vsel %vm887, 0.0, %v941
        %v943 = vsel %vm887, %v937, %v918
        %v945 = vunpack.c.l.s4 1983009808
        %v946 = vunpack.c.0.s8 %v945
        %v947 = vperm.slane %v943, %v946
        %v948 = vrot.slane %v938, 4
        %v949 = vsel %vm887, %v948, %v936
        %v951 = vunpack.c.l.s4 1983009808
        %v952 = vunpack.c.0.s8 %v951
        %v953 = vperm.slane %v949, %v952
        %v954 = vsel %vm887, %v941, %v930
        %v956 = vunpack.c.l.s4 1983009808
        %v957 = vunpack.c.0.s8 %v956
        %v958 = vperm.slane %v954, %v957
        %v959 = vrot.slane %v942, 4
        %v960 = vsel %vm887, %v959, %v940
        %v962 = vunpack.c.l.s4 1983009808
        %v963 = vunpack.c.0.s8 %v962
        %v964 = vperm.slane %v960, %v963
        %v965 = vrot.slane %v953, 4
        %v966 = vsel %vm887, %v965, %v947
        %v967 = vrot.slane %v947, 4
        %v968 = vsel %vm887, %v953, %v967
        %v970 = vunpack.c.l.s4 1934713408
        %v971 = vunpack.c.0.s8 %v970
        %v972 = vperm.slane %v966, %v971
        %v974 = vunpack.c.l.s4 1934713408
        %v975 = vunpack.c.0.s8 %v974
        %v976 = vperm.slane %v968, %v975
        %v977 = vrot.slane %v964, 4
        %v978 = vsel %vm887, %v977, %v958
        %v979 = vrot.slane %v958, 4
        %v980 = vsel %vm887, %v964, %v979
        %v982 = vunpack.c.l.s4 1934713408
        %v983 = vunpack.c.0.s8 %v982
        %v984 = vperm.slane %v978, %v983
        %v986 = vunpack.c.l.s4 1934713408
        %v987 = vunpack.c.0.s8 %v986
        %v988 = vperm.slane %v980, %v987
        %v989 = vrot.slane %v984, 4
        %v990 = vsel %vm887, %v989, %v972
        %v991 = vrot.slane %v972, 4
        %v992 = vsel %vm887, %v984, %v991
        %v993 = vrot.slane %v988, 4
        %v994 = vsel %vm887, %v993, %v976
        %v995 = vrot.slane %v976, 4
        %v996 = vsel %vm887, %v988, %v995
        %998 = vrot.lane.b32.xlu0 %v845, 120
        %v999 = vpop.permute.xlu0 %998
        %1001 = vrot.lane.b32.xlu0 %v845, 112
        %v1002 = vpop.permute.xlu0 %1001
        %1004 = vrot.lane.b32.xlu0 %v845, 104
        %v1005 = vpop.permute.xlu0 %1004
        %v1007 = vrot.slane %v1002, 4
        %v1008 = vsel %vm887, %v1007, %v845
        %v1009 = vrot.slane %v845, 4
        %v1010 = vsel %vm887, %v1002, %v1009
        %v1012 = vunpack.c.l.s4 1983009808
        %v1013 = vunpack.c.0.s8 %v1012
        %v1014 = vperm.slane %v1008, %v1013
        %v1016 = vunpack.c.l.s4 1983009808
        %v1017 = vunpack.c.0.s8 %v1016
        %v1018 = vperm.slane %v1010, %v1017
        %v1019 = vrot.slane %v1005, 4
        %v1020 = vsel %vm887, %v1019, %v999
        %v1021 = vrot.slane %v999, 4
        %v1022 = vsel %vm887, %v1005, %v1021
        %v1024 = vunpack.c.l.s4 1983009808
        %v1025 = vunpack.c.0.s8 %v1024
        %v1026 = vperm.slane %v1020, %v1025
        %v1028 = vunpack.c.l.s4 1983009808
        %v1029 = vunpack.c.0.s8 %v1028
        %v1030 = vperm.slane %v1022, %v1029
        %v1031 = vrot.slane %v1026, 4
        %v1032 = vsel %vm887, %v1031, %v1014
        %v1033 = vrot.slane %v1014, 4
        %v1034 = vsel %vm887, %v1026, %v1033
        %v1036 = vunpack.c.l.s4 1934713408
        %v1037 = vunpack.c.0.s8 %v1036
        %v1038 = vperm.slane %v1032, %v1037
        %v1040 = vunpack.c.l.s4 1934713408
        %v1041 = vunpack.c.0.s8 %v1040
        %v1042 = vperm.slane %v1034, %v1041
        %v1043 = vrot.slane %v1030, 4
        %v1044 = vsel %vm887, %v1043, %v1018
        %v1045 = vrot.slane %v1018, 4
        %v1046 = vsel %vm887, %v1030, %v1045
        %v1048 = vunpack.c.l.s4 1934713408
        %v1049 = vunpack.c.0.s8 %v1048
        %v1050 = vperm.slane %v1044, %v1049
        %v1052 = vunpack.c.l.s4 1934713408
        %v1053 = vunpack.c.0.s8 %v1052
        %v1054 = vperm.slane %v1046, %v1053
        %v1055 = vrot.slane %v1038, 4
        %v1056 = vsel %vm887, 0.0, %v1055
        %v1057 = vrot.slane %v1042, 4
        %v1058 = vsel %vm887, 0.0, %v1057
        %v1059 = vrot.slane %v1050, 4
        %v1060 = vsel %vm887, 0.0, %v1059
        %v1061 = vrot.slane %v1054, 4
        %v1062 = vsel %vm887, 0.0, %v1061
        %v1063 = vsel %vm887, %v1057, %v1038
        %v1065 = vunpack.c.l.s4 1983009808
        %v1066 = vunpack.c.0.s8 %v1065
        %v1067 = vperm.slane %v1063, %v1066
        %v1068 = vrot.slane %v1058, 4
        %v1069 = vsel %vm887, %v1068, %v1056
        %v1071 = vunpack.c.l.s4 1983009808
        %v1072 = vunpack.c.0.s8 %v1071
        %v1073 = vperm.slane %v1069, %v1072
        %v1074 = vsel %vm887, %v1061, %v1050
        %v1076 = vunpack.c.l.s4 1983009808
        %v1077 = vunpack.c.0.s8 %v1076
        %v1078 = vperm.slane %v1074, %v1077
        %v1079 = vrot.slane %v1062, 4
        %v1080 = vsel %vm887, %v1079, %v1060
        %v1082 = vunpack.c.l.s4 1983009808
        %v1083 = vunpack.c.0.s8 %v1082
        %v1084 = vperm.slane %v1080, %v1083
        %v1085 = vrot.slane %v1073, 4
        %v1086 = vsel %vm887, %v1085, %v1067
        %v1087 = vrot.slane %v1067, 4
        %v1088 = vsel %vm887, %v1073, %v1087
        %v1090 = vunpack.c.l.s4 1934713408
        %v1091 = vunpack.c.0.s8 %v1090
        %v1092 = vperm.slane %v1086, %v1091
        %v1094 = vunpack.c.l.s4 1934713408
        %v1095 = vunpack.c.0.s8 %v1094
        %v1096 = vperm.slane %v1088, %v1095
        %v1097 = vrot.slane %v1084, 4
        %v1098 = vsel %vm887, %v1097, %v1078
        %v1099 = vrot.slane %v1078, 4
        %v1100 = vsel %vm887, %v1084, %v1099
        %v1102 = vunpack.c.l.s4 1934713408
        %v1103 = vunpack.c.0.s8 %v1102
        %v1104 = vperm.slane %v1098, %v1103
        %v1106 = vunpack.c.l.s4 1934713408
        %v1107 = vunpack.c.0.s8 %v1106
        %v1108 = vperm.slane %v1100, %v1107
        %v1109 = vrot.slane %v1104, 4
        %v1110 = vsel %vm887, %v1109, %v1092
        %v1111 = vrot.slane %v1092, 4
        %v1112 = vsel %vm887, %v1104, %v1111
        %v1113 = vrot.slane %v1108, 4
        %v1114 = vsel %vm887, %v1113, %v1096
        %v1115 = vrot.slane %v1096, 4
        %v1116 = vsel %vm887, %v1108, %v1115
        %1118 = vrot.lane.b32.xlu0 %v873, 120
        %v1119 = vpop.permute.xlu0 %1118
        %1121 = vrot.lane.b32.xlu0 %v873, 112
        %v1122 = vpop.permute.xlu0 %1121
        %1124 = vrot.lane.b32.xlu0 %v873, 104
        %v1125 = vpop.permute.xlu0 %1124
        %v1127 = vrot.slane %v1122, 4
        %v1128 = vsel %vm887, %v1127, %v873
        %v1129 = vrot.slane %v873, 4
        %v1130 = vsel %vm887, %v1122, %v1129
        %v1132 = vunpack.c.l.s4 1983009808
        %v1133 = vunpack.c.0.s8 %v1132
        %v1134 = vperm.slane %v1128, %v1133
        %v1136 = vunpack.c.l.s4 1983009808
        %v1137 = vunpack.c.0.s8 %v1136
        %v1138 = vperm.slane %v1130, %v1137
        %v1139 = vrot.slane %v1125, 4
        %v1140 = vsel %vm887, %v1139, %v1119
        %v1141 = vrot.slane %v1119, 4
        %v1142 = vsel %vm887, %v1125, %v1141
        %v1144 = vunpack.c.l.s4 1983009808
        %v1145 = vunpack.c.0.s8 %v1144
        %v1146 = vperm.slane %v1140, %v1145
        %v1148 = vunpack.c.l.s4 1983009808
        %v1149 = vunpack.c.0.s8 %v1148
        %v1150 = vperm.slane %v1142, %v1149
        %v1151 = vrot.slane %v1146, 4
        %v1152 = vsel %vm887, %v1151, %v1134
        %v1153 = vrot.slane %v1134, 4
        %v1154 = vsel %vm887, %v1146, %v1153
        %v1156 = vunpack.c.l.s4 1934713408
        %v1157 = vunpack.c.0.s8 %v1156
        %v1158 = vperm.slane %v1152, %v1157
        %v1160 = vunpack.c.l.s4 1934713408
        %v1161 = vunpack.c.0.s8 %v1160
        %v1162 = vperm.slane %v1154, %v1161
        %v1163 = vrot.slane %v1150, 4
        %v1164 = vsel %vm887, %v1163, %v1138
        %v1165 = vrot.slane %v1138, 4
        %v1166 = vsel %vm887, %v1150, %v1165
        %v1168 = vunpack.c.l.s4 1934713408
        %v1169 = vunpack.c.0.s8 %v1168
        %v1170 = vperm.slane %v1164, %v1169
        %v1172 = vunpack.c.l.s4 1934713408
        %v1173 = vunpack.c.0.s8 %v1172
        %v1174 = vperm.slane %v1166, %v1173
        %v1175 = vrot.slane %v1158, 4
        %v1176 = vsel %vm887, 0.0, %v1175
        %v1177 = vrot.slane %v1162, 4
        %v1178 = vsel %vm887, 0.0, %v1177
        %v1179 = vrot.slane %v1170, 4
        %v1180 = vsel %vm887, 0.0, %v1179
        %v1181 = vrot.slane %v1174, 4
        %v1182 = vsel %vm887, 0.0, %v1181
        %v1183 = vsel %vm887, %v1177, %v1158
        %v1185 = vunpack.c.l.s4 1983009808
        %v1186 = vunpack.c.0.s8 %v1185
        %v1187 = vperm.slane %v1183, %v1186
        %v1188 = vrot.slane %v1178, 4
        %v1189 = vsel %vm887, %v1188, %v1176
        %v1191 = vunpack.c.l.s4 1983009808
        %v1192 = vunpack.c.0.s8 %v1191
        %v1193 = vperm.slane %v1189, %v1192
        %v1194 = vsel %vm887, %v1181, %v1170
        %v1196 = vunpack.c.l.s4 1983009808
        %v1197 = vunpack.c.0.s8 %v1196
        %v1198 = vperm.slane %v1194, %v1197
        %v1199 = vrot.slane %v1182, 4
        %v1200 = vsel %vm887, %v1199, %v1180
        %v1202 = vunpack.c.l.s4 1983009808
        %v1203 = vunpack.c.0.s8 %v1202
        %v1204 = vperm.slane %v1200, %v1203
        %v1205 = vrot.slane %v1193, 4
        %v1206 = vsel %vm887, %v1205, %v1187
        %v1207 = vrot.slane %v1187, 4
        %v1208 = vsel %vm887, %v1193, %v1207
        %v1210 = vunpack.c.l.s4 1934713408
        %v1211 = vunpack.c.0.s8 %v1210
        %v1212 = vperm.slane %v1206, %v1211
        %v1214 = vunpack.c.l.s4 1934713408
        %v1215 = vunpack.c.0.s8 %v1214
        %v1216 = vperm.slane %v1208, %v1215
        %v1217 = vrot.slane %v1204, 4
        %v1218 = vsel %vm887, %v1217, %v1198
        %v1219 = vrot.slane %v1198, 4
        %v1220 = vsel %vm887, %v1204, %v1219
        %v1222 = vunpack.c.l.s4 1934713408
        %v1223 = vunpack.c.0.s8 %v1222
        %v1224 = vperm.slane %v1218, %v1223
        %v1226 = vunpack.c.l.s4 1934713408
        %v1227 = vunpack.c.0.s8 %v1226
        %v1228 = vperm.slane %v1220, %v1227
        %v1229 = vrot.slane %v1224, 4
        %v1230 = vsel %vm887, %v1229, %v1212
        %v1231 = vrot.slane %v1212, 4
        %v1232 = vsel %vm887, %v1224, %v1231
        %v1233 = vrot.slane %v1228, 4
        %v1234 = vsel %vm887, %v1233, %v1216
        %v1235 = vrot.slane %v1216, 4
        %v1236 = vsel %vm887, %v1228, %v1235
        %v1238 = vperm.slane %v783, 0
        %vm1240 = vcmask 64512
        %v1242 = vsel %vm1240, %v990, 0
        %v1245 = vsel %vm1240, %v1110, 0
        %1247 = vmatpush.xpose.msra.mxu0 0.0
        %1248 = vmatpush.xpose.msra.mxu0 0.0
        %1249 = vmatpush.xpose.msra.mxu0 0.0
        %1250 = vmatpush.xpose.msra.mxu0 0.0
        %1251 = vmatpush.xpose.msra.mxu0 0.0
        %1252 = vmatpush.xpose.msra.mxu0 0.0
        %1253 = vmatpush.xpose.msra.mxu0 0.0
        %1254 = vmatpush.xpose.msra.mxu0 0.0
        %1255 = vmatpush.xpose.msra.mxu0 0.0
        %1256 = vmatpush.xpose.msra.mxu0 0.0
        %1257 = vmatpush.xpose.msra.mxu0 0.0
        %1258 = vmatpush.xpose.msra.mxu0 0.0
        %1259 = vmatpush.xpose.msra.mxu0 0.0
        %1260 = vmatpush.xpose.msra.mxu0 0.0
        %1261 = vmatpush.xpose.msra.mxu0 0.0
        %1262 = vmatpush.xpose.msra.mxu0 %v1245
        %1263 = vmatmul.f32.gmra.mxu0 %v1242
        %v1264 = vpop.f32.mrf.mxu0
        %v1265 = vadd.f32 %v1238, %v1264
        %1266 = vdwg.mxu0
        %v1268 = vsel %vm1240, %v992, 0
        %v1271 = vsel %vm1240, %v1112, 0
        %1273 = vmatpush.xpose.msra.mxu0 0.0
        %1274 = vmatpush.xpose.msra.mxu0 0.0
        %1275 = vmatpush.xpose.msra.mxu0 0.0
        %1276 = vmatpush.xpose.msra.mxu0 0.0
        %1277 = vmatpush.xpose.msra.mxu0 0.0
        %1278 = vmatpush.xpose.msra.mxu0 0.0
        %1279 = vmatpush.xpose.msra.mxu0 0.0
        %1280 = vmatpush.xpose.msra.mxu0 0.0
        %1281 = vmatpush.xpose.msra.mxu0 0.0
        %1282 = vmatpush.xpose.msra.mxu0 0.0
        %1283 = vmatpush.xpose.msra.mxu0 0.0
        %1284 = vmatpush.xpose.msra.mxu0 0.0
        %1285 = vmatpush.xpose.msra.mxu0 0.0
        %1286 = vmatpush.xpose.msra.mxu0 0.0
        %1287 = vmatpush.xpose.msra.mxu0 0.0
        %1288 = vmatpush.xpose.msra.mxu0 %v1271
        %1289 = vmatmul.f32.gmra.mxu0 %v1268
        %v1290 = vpop.f32.mrf.mxu0
        %v1291 = vadd.f32 %v1238, %v1290
        %1292 = vdwg.mxu0
        %v1294 = vsel %vm1240, %v994, 0
        %v1297 = vsel %vm1240, %v1114, 0
        %1299 = vmatpush.xpose.msra.mxu0 0.0
        %1300 = vmatpush.xpose.msra.mxu0 0.0
        %1301 = vmatpush.xpose.msra.mxu0 0.0
        %1302 = vmatpush.xpose.msra.mxu0 0.0
        %1303 = vmatpush.xpose.msra.mxu0 0.0
        %1304 = vmatpush.xpose.msra.mxu0 0.0
        %1305 = vmatpush.xpose.msra.mxu0 0.0
        %1306 = vmatpush.xpose.msra.mxu0 0.0
        %1307 = vmatpush.xpose.msra.mxu0 0.0
        %1308 = vmatpush.xpose.msra.mxu0 0.0
        %1309 = vmatpush.xpose.msra.mxu0 0.0
        %1310 = vmatpush.xpose.msra.mxu0 0.0
        %1311 = vmatpush.xpose.msra.mxu0 0.0
        %1312 = vmatpush.xpose.msra.mxu0 0.0
        %1313 = vmatpush.xpose.msra.mxu0 0.0
        %1314 = vmatpush.xpose.msra.mxu0 %v1297
        %1315 = vmatmul.f32.gmra.mxu0 %v1294
        %v1316 = vpop.f32.mrf.mxu0
        %v1317 = vadd.f32 %v1238, %v1316
        %1318 = vdwg.mxu0
        %v1320 = vsel %vm1240, %v996, 0
        %v1323 = vsel %vm1240, %v1116, 0
        %1325 = vmatpush.xpose.msra.mxu0 0.0
        %1326 = vmatpush.xpose.msra.mxu0 0.0
        %1327 = vmatpush.xpose.msra.mxu0 0.0
        %1328 = vmatpush.xpose.msra.mxu0 0.0
        %1329 = vmatpush.xpose.msra.mxu0 0.0
        %1330 = vmatpush.xpose.msra.mxu0 0.0
        %1331 = vmatpush.xpose.msra.mxu0 0.0
        %1332 = vmatpush.xpose.msra.mxu0 0.0
        %1333 = vmatpush.xpose.msra.mxu0 0.0
        %1334 = vmatpush.xpose.msra.mxu0 0.0
        %1335 = vmatpush.xpose.msra.mxu0 0.0
        %1336 = vmatpush.xpose.msra.mxu0 0.0
        %1337 = vmatpush.xpose.msra.mxu0 0.0
        %1338 = vmatpush.xpose.msra.mxu0 0.0
        %1339 = vmatpush.xpose.msra.mxu0 0.0
        %1340 = vmatpush.xpose.msra.mxu0 %v1323
        %1341 = vmatmul.f32.gmra.mxu0 %v1320
        %v1342 = vpop.f32.mrf.mxu0
        %v1343 = vadd.f32 %v1238, %v1342
        %1344 = vdwg.mxu0
        %v1345 = vsel %vm1240, %v1265, -inf
        %1346 = vmax.xlane.f32.xlu0 %v1345
        %v1347 = vpop.xlane.xlu0 %1346
        %v1348 = vsel %vm1240, %v1291, -inf
        %1349 = vmax.xlane.f32.xlu0 %v1348
        %v1350 = vpop.xlane.xlu0 %1349
        %v1351 = vsel %vm1240, %v1317, -inf
        %1352 = vmax.xlane.f32.xlu0 %v1351
        %v1353 = vpop.xlane.xlu0 %1352
        %v1354 = vsel %vm1240, %v1343, -inf
        %1355 = vmax.xlane.f32.xlu0 %v1354
        %v1356 = vpop.xlane.xlu0 %1355
        %v1357 = vsub.f32 %v1265, %v1347
        %v1358 = vsub.f32 %v1291, %v1350
        %v1359 = vsub.f32 %v1317, %v1353
        %v1360 = vsub.f32 %v1343, %v1356
        %v1361 = vmul.f32 %v1357, 1.442695
        %v1362 = vpow.pop %v1361
        %v1363 = vmul.f32 %v1358, 1.442695
        %v1364 = vpow.pop %v1363
        %v1365 = vmul.f32 %v1359, 1.442695
        %v1366 = vpow.pop %v1365
        %v1367 = vmul.f32 %v1360, 1.442695
        %v1368 = vpow.pop %v1367
        %v1369 = vsel %vm1240, %v1362, 0.0
        %1370 = vadd.xlane.f32.xlu0 %v1369
        %v1371 = vpop.xlane.xlu0 %1370
        %v1372 = vsel %vm1240, %v1364, 0.0
        %1373 = vadd.xlane.f32.xlu0 %v1372
        %v1374 = vpop.xlane.xlu0 %1373
        %v1375 = vsel %vm1240, %v1366, 0.0
        %1376 = vadd.xlane.f32.xlu0 %v1375
        %v1377 = vpop.xlane.xlu0 %1376
        %v1378 = vsel %vm1240, %v1368, 0.0
        %1379 = vadd.xlane.f32.xlu0 %v1378
        %v1380 = vpop.xlane.xlu0 %1379
        %v1381 = vrcp.pop %v1371
        %v1382 = vmul.f32 %v1371, %v1381
        %v1383 = vsub.f32 1.0, %v1382
        %v1384 = vmul.f32 %v1381, %v1383
        %v1385 = vadd.f32 %v1381, %v1384
        %vm1386 = vweird.f32 %v1371
        %vm1387 = vweird.f32 %v1381
        %vm1388 = vmor %vm1386, %vm1387
        %v1389 = vsel %vm1388, %v1381, %v1385
        %v1390 = vand.u32 2147483647, %v1371
        %vm1391 = vcmp.eq.f32.partialorder %v1390, 8.507059e+37
        %v1392 = vand.u32 %v1371, 2147483648
        %v1393 = vor.u32 1.1754944e-38, %v1392
        %v1394 = vsel %vm1391, %v1393, %v1389
        %v1395 = vrcp.pop %v1374
        %v1396 = vmul.f32 %v1374, %v1395
        %v1397 = vsub.f32 1.0, %v1396
        %v1398 = vmul.f32 %v1395, %v1397
        %v1399 = vadd.f32 %v1395, %v1398
        %vm1400 = vweird.f32 %v1374
        %vm1401 = vweird.f32 %v1395
        %vm1402 = vmor %vm1400, %vm1401
        %v1403 = vsel %vm1402, %v1395, %v1399
        %v1404 = vand.u32 2147483647, %v1374
        %vm1405 = vcmp.eq.f32.partialorder %v1404, 8.507059e+37
        %v1406 = vand.u32 %v1374, 2147483648
        %v1407 = vor.u32 1.1754944e-38, %v1406
        %v1408 = vsel %vm1405, %v1407, %v1403
        %v1409 = vrcp.pop %v1377
        %v1410 = vmul.f32 %v1377, %v1409
        %v1411 = vsub.f32 1.0, %v1410
        %v1412 = vmul.f32 %v1409, %v1411
        %v1413 = vadd.f32 %v1409, %v1412
        %vm1414 = vweird.f32 %v1377
        %vm1415 = vweird.f32 %v1409
        %vm1416 = vmor %vm1414, %vm1415
        %v1417 = vsel %vm1416, %v1409, %v1413
        %v1418 = vand.u32 2147483647, %v1377
        %vm1419 = vcmp.eq.f32.partialorder %v1418, 8.507059e+37
        %v1420 = vand.u32 %v1377, 2147483648
        %v1421 = vor.u32 1.1754944e-38, %v1420
        %v1422 = vsel %vm1419, %v1421, %v1417
        %v1423 = vrcp.pop %v1380
        %v1424 = vmul.f32 %v1380, %v1423
        %v1425 = vsub.f32 1.0, %v1424
        %v1426 = vmul.f32 %v1423, %v1425
        %v1427 = vadd.f32 %v1423, %v1426
        %vm1428 = vweird.f32 %v1380
        %vm1429 = vweird.f32 %v1423
        %vm1430 = vmor %vm1428, %vm1429
        %v1431 = vsel %vm1430, %v1423, %v1427
        %v1432 = vand.u32 2147483647, %v1380
        %vm1433 = vcmp.eq.f32.partialorder %v1432, 8.507059e+37
        %v1434 = vand.u32 %v1380, 2147483648
        %v1435 = vor.u32 1.1754944e-38, %v1434
        %v1436 = vsel %vm1433, %v1435, %v1431
        %v1437 = vmul.f32 %v1362, %v1394
        %v1438 = vmul.f32 %v1364, %v1408
        %v1439 = vmul.f32 %v1366, %v1422
        %v1440 = vmul.f32 %v1368, %v1436
        %v1441 = vsel %vm1240, %v1437, 0.0
        %v1442 = vsel %vm1240, %v1438, 0.0
        %v1443 = vadd.f32 %v1441, %v1442
        %v1444 = vsel %vm1240, %v1439, 0.0
        %v1445 = vadd.f32 %v1443, %v1444
        %v1446 = vsel %vm1240, %v1440, 0.0
        %v1447 = vadd.f32 %v1445, %v1446
        %v1448 = vmul.f32 %v1447, 0.25
        %1449 = vst.msk [vmem:[%s780] sm:$0xff] %vm1240, %v1448
        %v1451 = vsel %vm1240, %v1437, 0
        %1453 = vmatpush.msra.mxu0 0.0
        %1454 = vmatpush.msra.mxu0 0.0
        %1455 = vmatpush.msra.mxu0 0.0
        %1456 = vmatpush.msra.mxu0 0.0
        %1457 = vmatpush.msra.mxu0 0.0
        %1458 = vmatpush.msra.mxu0 0.0
        %1459 = vmatpush.msra.mxu0 0.0
        %1460 = vmatpush.msra.mxu0 0.0
        %1461 = vmatpush.msra.mxu0 0.0
        %1462 = vmatpush.msra.mxu0 0.0
        %1463 = vmatpush.msra.mxu0 0.0
        %1464 = vmatpush.msra.mxu0 0.0
        %1465 = vmatpush.msra.mxu0 0.0
        %1466 = vmatpush.msra.mxu0 0.0
        %1467 = vmatpush.msra.mxu0 0.0
        %1468 = vmatpush.msra.mxu0 %v1230
        %1469 = vmatmul.f32.gmra.mxu0 %v1451
        %v1470 = vpop.f32.mrf.mxu0
        %v1471 = vadd.f32 0.0, %v1470
        %1472 = vdwg.mxu0
        %v1474 = vsel %vm1240, %v1438, 0
        %1476 = vmatpush.msra.mxu0 0.0
        %1477 = vmatpush.msra.mxu0 0.0
        %1478 = vmatpush.msra.mxu0 0.0
        %1479 = vmatpush.msra.mxu0 0.0
        %1480 = vmatpush.msra.mxu0 0.0
        %1481 = vmatpush.msra.mxu0 0.0
        %1482 = vmatpush.msra.mxu0 0.0
        %1483 = vmatpush.msra.mxu0 0.0
        %1484 = vmatpush.msra.mxu0 0.0
        %1485 = vmatpush.msra.mxu0 0.0
        %1486 = vmatpush.msra.mxu0 0.0
        %1487 = vmatpush.msra.mxu0 0.0
        %1488 = vmatpush.msra.mxu0 0.0
        %1489 = vmatpush.msra.mxu0 0.0
        %1490 = vmatpush.msra.mxu0 0.0
        %1491 = vmatpush.msra.mxu0 %v1232
        %1492 = vmatmul.f32.gmra.mxu0 %v1474
        %v1493 = vpop.f32.mrf.mxu0
        %v1494 = vadd.f32 0.0, %v1493
        %1495 = vdwg.mxu0
        %v1497 = vsel %vm1240, %v1439, 0
        %1499 = vmatpush.msra.mxu0 0.0
        %1500 = vmatpush.msra.mxu0 0.0
        %1501 = vmatpush.msra.mxu0 0.0
        %1502 = vmatpush.msra.mxu0 0.0
        %1503 = vmatpush.msra.mxu0 0.0
        %1504 = vmatpush.msra.mxu0 0.0
        %1505 = vmatpush.msra.mxu0 0.0
        %1506 = vmatpush.msra.mxu0 0.0
        %1507 = vmatpush.msra.mxu0 0.0
        %1508 = vmatpush.msra.mxu0 0.0
        %1509 = vmatpush.msra.mxu0 0.0
        %1510 = vmatpush.msra.mxu0 0.0
        %1511 = vmatpush.msra.mxu0 0.0
        %1512 = vmatpush.msra.mxu0 0.0
        %1513 = vmatpush.msra.mxu0 0.0
        %1514 = vmatpush.msra.mxu0 %v1234
        %1515 = vmatmul.f32.gmra.mxu0 %v1497
        %v1516 = vpop.f32.mrf.mxu0
        %v1517 = vadd.f32 0.0, %v1516
        %1518 = vdwg.mxu0
        %v1520 = vsel %vm1240, %v1440, 0
        %1522 = vmatpush.msra.mxu0 0.0
        %1523 = vmatpush.msra.mxu0 0.0
        %1524 = vmatpush.msra.mxu0 0.0
        %1525 = vmatpush.msra.mxu0 0.0
        %1526 = vmatpush.msra.mxu0 0.0
        %1527 = vmatpush.msra.mxu0 0.0
        %1528 = vmatpush.msra.mxu0 0.0
        %1529 = vmatpush.msra.mxu0 0.0
        %1530 = vmatpush.msra.mxu0 0.0
        %1531 = vmatpush.msra.mxu0 0.0
        %1532 = vmatpush.msra.mxu0 0.0
        %1533 = vmatpush.msra.mxu0 0.0
        %1534 = vmatpush.msra.mxu0 0.0
        %1535 = vmatpush.msra.mxu0 0.0
        %1536 = vmatpush.msra.mxu0 0.0
        %1537 = vmatpush.msra.mxu0 %v1236
        %1538 = vmatmul.f32.gmra.mxu0 %v1520
        %v1539 = vpop.f32.mrf.mxu0
        %v1540 = vadd.f32 0.0, %v1539
        %1541 = vdwg.mxu0
        %v1542 = vrot.slane %v1517, 4
        %v1543 = vsel %vm887, %v1542, %v1471
        %v1544 = vrot.slane %v1471, 4
        %v1545 = vsel %vm887, %v1517, %v1544
        %v1547 = vunpack.c.l.s4 1983009808
        %v1548 = vunpack.c.0.s8 %v1547
        %v1549 = vperm.slane %v1543, %v1548
        %v1551 = vunpack.c.l.s4 1983009808
        %v1552 = vunpack.c.0.s8 %v1551
        %v1553 = vperm.slane %v1545, %v1552
        %v1554 = vrot.slane %v1540, 4
        %v1555 = vsel %vm887, %v1554, %v1494
        %v1556 = vrot.slane %v1494, 4
        %v1557 = vsel %vm887, %v1540, %v1556
        %v1559 = vunpack.c.l.s4 1983009808
        %v1560 = vunpack.c.0.s8 %v1559
        %v1561 = vperm.slane %v1555, %v1560
        %v1563 = vunpack.c.l.s4 1983009808
        %v1564 = vunpack.c.0.s8 %v1563
        %v1565 = vperm.slane %v1557, %v1564
        %v1566 = vrot.slane %v1561, 4
        %v1567 = vsel %vm887, %v1566, %v1549
        %v1568 = vrot.slane %v1549, 4
        %v1569 = vsel %vm887, %v1561, %v1568
        %v1571 = vunpack.c.l.s4 1934713408
        %v1572 = vunpack.c.0.s8 %v1571
        %v1573 = vperm.slane %v1567, %v1572
        %v1575 = vunpack.c.l.s4 1934713408
        %v1576 = vunpack.c.0.s8 %v1575
        %v1577 = vperm.slane %v1569, %v1576
        %v1578 = vrot.slane %v1565, 4
        %v1579 = vsel %vm887, %v1578, %v1553
        %v1580 = vrot.slane %v1553, 4
        %v1581 = vsel %vm887, %v1565, %v1580
        %v1583 = vunpack.c.l.s4 1934713408
        %v1584 = vunpack.c.0.s8 %v1583
        %v1585 = vperm.slane %v1579, %v1584
        %v1587 = vunpack.c.l.s4 1934713408
        %v1588 = vunpack.c.0.s8 %v1587
        %v1589 = vperm.slane %v1581, %v1588
        %v1590 = vrot.slane %v1573, 4
        %v1591 = vsel %vm887, 0.0, %v1590
        %v1592 = vrot.slane %v1577, 4
        %v1593 = vsel %vm887, 0.0, %v1592
        %v1594 = vrot.slane %v1585, 4
        %v1595 = vsel %vm887, 0.0, %v1594
        %v1596 = vrot.slane %v1589, 4
        %v1597 = vsel %vm887, 0.0, %v1596
        %v1598 = vsel %vm887, %v1592, %v1573
        %v1600 = vunpack.c.l.s4 1983009808
        %v1601 = vunpack.c.0.s8 %v1600
        %v1602 = vperm.slane %v1598, %v1601
        %v1603 = vrot.slane %v1593, 4
        %v1604 = vsel %vm887, %v1603, %v1591
        %v1606 = vunpack.c.l.s4 1983009808
        %v1607 = vunpack.c.0.s8 %v1606
        %v1608 = vperm.slane %v1604, %v1607
        %v1609 = vsel %vm887, %v1596, %v1585
        %v1611 = vunpack.c.l.s4 1983009808
        %v1612 = vunpack.c.0.s8 %v1611
        %v1613 = vperm.slane %v1609, %v1612
        %v1614 = vrot.slane %v1597, 4
        %v1615 = vsel %vm887, %v1614, %v1595
        %v1617 = vunpack.c.l.s4 1983009808
        %v1618 = vunpack.c.0.s8 %v1617
        %v1619 = vperm.slane %v1615, %v1618
        %v1620 = vrot.slane %v1608, 4
        %v1621 = vsel %vm887, %v1620, %v1602
        %v1622 = vrot.slane %v1602, 4
        %v1623 = vsel %vm887, %v1608, %v1622
        %v1625 = vunpack.c.l.s4 1934713408
        %v1626 = vunpack.c.0.s8 %v1625
        %v1627 = vperm.slane %v1621, %v1626
        %v1629 = vunpack.c.l.s4 1934713408
        %v1630 = vunpack.c.0.s8 %v1629
        %v1631 = vperm.slane %v1623, %v1630
        %v1632 = vrot.slane %v1619, 4
        %v1633 = vsel %vm887, %v1632, %v1613
        %v1634 = vrot.slane %v1613, 4
        %v1635 = vsel %vm887, %v1619, %v1634
        %v1637 = vunpack.c.l.s4 1934713408
        %v1638 = vunpack.c.0.s8 %v1637
        %v1639 = vperm.slane %v1633, %v1638
        %v1641 = vunpack.c.l.s4 1934713408
        %v1642 = vunpack.c.0.s8 %v1641
        %v1643 = vperm.slane %v1635, %v1642
        %v1644 = vrot.slane %v1639, 4
        %v1645 = vsel %vm887, %v1644, %v1627
        %v1646 = vrot.slane %v1627, 4
        %v1647 = vsel %vm887, %v1639, %v1646
        %v1648 = vrot.slane %v1643, 4
        %v1649 = vsel %vm887, %v1648, %v1631
        %v1650 = vrot.slane %v1631, 4
        %v1651 = vsel %vm887, %v1643, %v1650
        %1653 = vrot.lane.b32.xlu0 %v1647, 8
        %v1654 = vpop.permute.xlu0 %1653
        %1657 = vrot.lane.b32.xlu0 %v1649, 16
        %v1658 = vpop.permute.xlu0 %1657
        %1661 = vrot.lane.b32.xlu0 %v1651, 24
        %v1662 = vpop.permute.xlu0 %1661
        %v1664 = vsel %vm1240, %v1645, %v1654
        %vm1665 = vcmask 130048
        %v1666 = vsel %vm1665, %v1664, %v1658
        %vm1667 = vcmask 195584
        %v1668 = vsel %vm1667, %v1666, %v1662
        %v1669 = vld [vmem:[#allocation8] sm:$0xff]
        %v1670 = vld [vmem:[#allocation8 + $0x8] sm:$0xff]
        %v1671 = vld [vmem:[#allocation8 + $0x10] sm:$0xff]
        %v1672 = vld [vmem:[#allocation8 + $0x18] sm:$0xff]
        %v1673 = vld [vmem:[%s10] sm:$0x1]
        %v1675 = vperm.slane %v1673, 0
        %v1678 = vsel %vm792, %v1668, 0
        %1680 = vmatpush.msra.mxu0 0.0
        %1681 = vmatpush.msra.mxu0 0.0
        %1682 = vmatpush.msra.mxu0 0.0
        %1683 = vmatpush.msra.mxu0 0.0
        %1684 = vmatpush.msra.mxu0 0.0
        %1685 = vmatpush.msra.mxu0 0.0
        %1686 = vmatpush.msra.mxu0 0.0
        %1687 = vmatpush.msra.mxu0 0.0
        %1688 = vmatpush.msra.mxu0 0.0
        %1689 = vmatpush.msra.mxu0 0.0
        %1690 = vmatpush.msra.mxu0 0.0
        %1691 = vmatpush.msra.mxu0 0.0
        %1692 = vmatpush.msra.mxu0 %v1672
        %1693 = vmatpush.msra.mxu0 %v1671
        %1694 = vmatpush.msra.mxu0 %v1670
        %1695 = vmatpush.msra.mxu0 %v1669
        %1696 = vmatmul.f32.gmra.mxu0 %v1678
        %v1697 = vpop.f32.mrf.mxu0
        %v1698 = vadd.f32 %v1675, %v1697
        %1699 = vdwg.mxu0
        %v1700 = vadd.f32 %v781, %v1698
        %v1701 = vsel %vm792, %v1700, 0.0
        %1702 = vadd.xlane.f32.xlu0 %v1701
        %v1703 = vpop.xlane.xlu0 %1702
        %v1704 = vrcp.pop 32.0
        %v1705 = vmul.f32 32.0, %v1704
        %v1706 = vsub.f32 1.0, %v1705
        %v1707 = vmul.f32 %v1704, %v1706
        %v1708 = vadd.f32 %v1704, %v1707
        %vm1709 = vweird.f32 %v1704
        %v1710 = vsel %vm1709, %v1704, %v1708
        %v1711 = vmul.f32 %v1703, %v1710
        %v1712 = vsub.f32 %v1700, %v1711
        %v1713 = vmul.f32 %v1712, %v1712
        %v1714 = vsel %vm792, %v1713, 0.0
        %1715 = vadd.xlane.f32.xlu0 %v1714
        %v1716 = vpop.xlane.xlu0 %1715
        %v1717 = vmul.f32 %v1716, %v1710
        %v1718 = vadd.f32 %v1717, 1e-05
        %v1719 = vrsqrt.pop %v1718
        %v1720 = vmul.f32 %v1719, %v1718
        %v1721 = vmul.f32 %v1720, %v1719
        %v1722 = vmul.f32 0.5, %v1721
        %v1723 = vsub.f32 1.5, %v1722
        %v1724 = vmul.f32 %v1719, %v1723
        %vm1725 = vweird.f32 %v1718
        %vm1726 = vweird.f32 %v1719
        %vm1727 = vmor %vm1725, %vm1726
        %v1728 = vsel %vm1727, %v1719, %v1724
        %v1729 = vmul.f32 %v1712, %v1728
        %v1730 = vld [vmem:[%s15] sm:$0x1]
        %v1732 = vperm.slane %v1730, 0
        %v1734 = vmul.f32 %v1729, %v1732
        %v1735 = vld [vmem:[%s16] sm:$0x1]
        %v1737 = vperm.slane %v1735, 0
        %v1739 = vadd.f32 %v1734, %v1737
        %v1740 = vld [vmem:[#allocation10] sm:$0xff]
        %v1741 = vld [vmem:[#allocation10 + $0x8] sm:$0xff]
        %v1742 = vld [vmem:[#allocation10 + $0x10] sm:$0xff]
        %v1743 = vld [vmem:[#allocation10 + $0x18] sm:$0xff]
        %v1744 = vld [vmem:[%s12] sm:$0x1]
        %v1746 = vperm.slane %v1744, 0
        %v1749 = vsel %vm792, %v1739, 0
        %1751 = vmatpush.msra.mxu0 0.0
        %1752 = vmatpush.msra.mxu0 0.0
        %1753 = vmatpush.msra.mxu0 0.0
        %1754 = vmatpush.msra.mxu0 0.0
        %1755 = vmatpush.msra.mxu0 0.0
        %1756 = vmatpush.msra.mxu0 0.0
        %1757 = vmatpush.msra.mxu0 0.0
        %1758 = vmatpush.msra.mxu0 0.0
        %1759 = vmatpush.msra.mxu0 0.0
        %1760 = vmatpush.msra.mxu0 0.0
        %1761 = vmatpush.msra.mxu0 0.0
        %1762 = vmatpush.msra.mxu0 0.0
        %1763 = vmatpush.msra.mxu0 %v1743
        %1764 = vmatpush.msra.mxu0 %v1742
        %1765 = vmatpush.msra.mxu0 %v1741
        %1766 = vmatpush.msra.mxu0 %v1740
        %1767 = vmatmul.f32.gmra.mxu0 %v1749
        %v1768 = vpop.f32.mrf.mxu0
        %v1769 = vadd.f32 %v1746, %v1768
        %1770 = vdwg.mxu0
        %v1771 = vmax.f32 %v1769, 0.0
        %v1772 = vld [vmem:[%s13] sm:$0xff]
        %v1773 = vld [vmem:[%s13 + $0x8] sm:$0xff]
        %v1774 = vld [vmem:[%s13 + $0x10] sm:$0xff]
        %v1775 = vld [vmem:[%s13 + $0x18] sm:$0xff]
        %v1776 = vld [vmem:[%s13 + $0x20] sm:$0xff]
        %v1777 = vld [vmem:[%s13 + $0x28] sm:$0xff]
        %v1778 = vld [vmem:[%s13 + $0x30] sm:$0xff]
        %v1779 = vld [vmem:[%s13 + $0x38] sm:$0xff]
        %v1780 = vld [vmem:[%s14] sm:$0x1]
        %v1782 = vperm.slane %v1780, 0
        %vm1784 = vcmask 523264
        %v1786 = vsel %vm1784, %v1771, 0
        %1788 = vmatpush.msra.mxu0 0.0
        %1789 = vmatpush.msra.mxu0 0.0
        %1790 = vmatpush.msra.mxu0 0.0
        %1791 = vmatpush.msra.mxu0 0.0
        %1792 = vmatpush.msra.mxu0 0.0
        %1793 = vmatpush.msra.mxu0 0.0
        %1794 = vmatpush.msra.mxu0 0.0
        %1795 = vmatpush.msra.mxu0 0.0
        %1796 = vmatpush.msra.mxu0 %v1779
        %1797 = vmatpush.msra.mxu0 %v1778
        %1798 = vmatpush.msra.mxu0 %v1777
        %1799 = vmatpush.msra.mxu0 %v1776
        %1800 = vmatpush.msra.mxu0 %v1775
        %1801 = vmatpush.msra.mxu0 %v1774
        %1802 = vmatpush.msra.mxu0 %v1773
        %1803 = vmatpush.msra.mxu0 %v1772
        %1804 = vmatmul.f32.gmra.mxu0 %v1786
        %v1805 = vpop.f32.mrf.mxu0
        %v1806 = vadd.f32 %v1782, %v1805
        %1807 = vdwg.mxu0
        %v1808 = vadd.f32 %v1739, %v1806
        %v1809 = vsel %vm792, %v1808, 0.0
        %1810 = vadd.xlane.f32.xlu0 %v1809
        %v1811 = vpop.xlane.xlu0 %1810
        %v1812 = vmul.f32 %v1811, %v1710
        %v1813 = vsub.f32 %v1808, %v1812
        %v1814 = vmul.f32 %v1813, %v1813
        %v1815 = vsel %vm792, %v1814, 0.0
        %1816 = vadd.xlane.f32.xlu0 %v1815
        %v1817 = vpop.xlane.xlu0 %1816
        %v1818 = vmul.f32 %v1817, %v1710
        %v1819 = vadd.f32 %v1818, 1e-05
        %v1820 = vrsqrt.pop %v1819
        %v1821 = vmul.f32 %v1820, %v1819
        %v1822 = vmul.f32 %v1821, %v1820
        %v1823 = vmul.f32 0.5, %v1822
        %v1824 = vsub.f32 1.5, %v1823
        %v1825 = vmul.f32 %v1820, %v1824
        %vm1826 = vweird.f32 %v1819
        %vm1827 = vweird.f32 %v1820
        %vm1828 = vmor %vm1826, %vm1827
        %v1829 = vsel %vm1828, %v1820, %v1825
        %v1830 = vmul.f32 %v1813, %v1829
        %v1831 = vld [vmem:[%s17] sm:$0x1]
        %v1833 = vperm.slane %v1831, 0
        %v1835 = vmul.f32 %v1830, %v1833
        %v1836 = vld [vmem:[%s18] sm:$0x1]
        %v1838 = vperm.slane %v1836, 0
        %v1840 = vadd.f32 %v1835, %v1838
        %1841 = vst.msk [vmem:[%s773] sm:$0xff] %vm792, %v1840
        %s1842 = sand.u32 %s483, 1
        %s1843 = scalar_lea.sflag [#allocation4], %s1842
        %s1844 = sand.u32 %s483, 1
        %s1845 = smul.addr %s1844, 8
        %s1846 = scalar_lea.vmem [#allocation11], %s1845
        %s1847 = sand.u32 %s511, 1
        %s1848 = scalar_lea.sflag [#allocation13], %s1847
        %s1849 = sand.u32 %s511, 1
        %s1850 = smul.addr %s1849, 8
        %s1851 = scalar_lea.vmem [#allocation12], %s1850
        // Predicated region
        $region117: #{tpu_custom_call.1} parent=95 // pred_check
          %p1852 = pneg %p493
        $region118: #{tpu_custom_call.1} parent=95 // pred_check_branch
          %1854 = sbr.rel (%p1852) target = $region120
        $region119: #{tpu_custom_call.1} parent=95 // pred_region
          %1856 = vsyncadd %s1843, 0
          %s1857 = sadd.s32 %s50, %s49
          %s1858 = smul.addr %s1857, 8
          %s1859 = scalar_lea.hbm %s19, %s1858
          %s1861 = sshll.u32 %s1846, 4
          %s1862 = int_to_ptr.vmem [resolvable:$true] %s1861
          %s1863 = sshll.u32 %s1859, 4
          %s1864 = int_to_ptr.hbm [resolvable:$true] %s1863
          %1866 = dma.vmem_to_hbm [thread:$0]  %s1862, 128, %s1864, %s1843
        $region120: #{tpu_custom_call.1} parent=95 // pred_fallthru
          _
        // Predicated region
        $region121: #{tpu_custom_call.1} parent=95 // pred_check
          %p1867 = pneg %p521
        $region122: #{tpu_custom_call.1} parent=95 // pred_check_branch
          %1869 = sbr.rel (%p1867) target = $region124
        $region123: #{tpu_custom_call.1} parent=95 // pred_region
          %1871 = vsyncadd %s1848, 0
          %s1872 = sadd.s32 %s50, %s49
          %s1873 = smul.addr %s1872, 8
          %s1874 = scalar_lea.hbm %s20, %s1873
          %s1876 = sshll.u32 %s1851, 4
          %s1877 = int_to_ptr.vmem [resolvable:$true] %s1876
          %s1878 = sshll.u32 %s1874, 4
          %s1879 = int_to_ptr.hbm [resolvable:$true] %s1878
          %1881 = dma.vmem_to_hbm [thread:$0]  %s1877, 128, %s1879, %s1848
        $region124: #{tpu_custom_call.1} parent=95 // pred_fallthru
          _
      $region96: #{tpu_custom_call.1} parent=5 // pred_fallthru
        _
      %p1882 = scmp.le.s32.totalorder 2, %s40
      // Predicated region
      $region125: #{tpu_custom_call.1} parent=5 // pred_check
        %p1883 = pneg %p1882
      $region126: #{tpu_custom_call.1} parent=5 // pred_check_branch
        %1885 = sbr.rel (%p1883) target = $region128
      $region127: #{tpu_custom_call.1} parent=5 // pred_region
        %s1886 = ssub.s32 %s40, 2
        // Predicated region
        $region129: #{tpu_custom_call.1} parent=127 // pred_check
          %p1887 = pneg %p499
        $region130: #{tpu_custom_call.1} parent=127 // pred_check_branch
          %1889 = sbr.rel (%p1887) target = $region132
        $region131: #{tpu_custom_call.1} parent=127 // pred_region
          %s1890 = sand.u32 %s484, 1
          %s1891 = scalar_lea.sflag [#allocation4], %s1890
          %s1892 = sand.u32 %s484, 1
          %s1893 = smul.addr %s1892, 8
          %s1894 = scalar_lea.vmem [#allocation11], %s1893
          %1896 = dma.done %s1891, 128
        $region132: #{tpu_custom_call.1} parent=127 // pred_fallthru
          _
        // Predicated region
        $region133: #{tpu_custom_call.1} parent=127 // pred_check
          %p1897 = pneg %p527
        $region134: #{tpu_custom_call.1} parent=127 // pred_check_branch
          %1899 = sbr.rel (%p1897) target = $region136
        $region135: #{tpu_custom_call.1} parent=127 // pred_region
          %s1900 = sand.u32 %s512, 1
          %s1901 = scalar_lea.sflag [#allocation13], %s1900
          %s1902 = sand.u32 %s512, 1
          %s1903 = smul.addr %s1902, 8
          %s1904 = scalar_lea.vmem [#allocation12], %s1903
          %1906 = dma.done %s1901, 128
        $region136: #{tpu_custom_call.1} parent=127 // pred_fallthru
          _
      $region128: #{tpu_custom_call.1} parent=5 // pred_fallthru
        _
    $region6: #{tpu_custom_call.1} parent=1 // loop_footer
      %s44 = sadd.s32 1, %s40
    $region7: #{tpu_custom_call.1} parent=1 // loop_footer_branch
      %39 = sbr.rel target = $region3
    $region8: #{tpu_custom_call.1} parent=1 // loop_exit
      _
    %1907 = vsyncpa [#allocation3], 1
    %s1908 = scalar_lea.sflag [#allocation3], 1
    %1909 = vsyncpa %s1908, 1
    %1910 = vsyncpa [#allocation6], 1
    %s1911 = scalar_lea.sflag [#allocation6], 1
    %1912 = vsyncpa %s1911, 1
    %1913 = vsyncpa [#allocation9], 1
    %1914 = vsyncpa [#allocation4], 1
    %s1915 = scalar_lea.sflag [#allocation4], 1
    %1916 = vsyncpa %s1915, 1
    %1917 = vsyncpa [#allocation13], 1
    %s1918 = scalar_lea.sflag [#allocation13], 1
    %1919 = vsyncpa %s1918, 1

</llo_original>
